<compile_context>
chip_gen: v7x
topology: tpu7x:2x2x1
jax: 0.10.0
libtpu: 0.0.40
codegen_flags: <defaults>
</compile_context>

<pallas_src>
import functools
import math

import jax
import jax.numpy as jnp
from jax import lax
from jax.experimental import pallas as pl
from jax.experimental.pallas import tpu as pltpu

EPS = 1e-6  # matches LayerNormalization(eps=10**-6)


# ----------------------------------------------------------------------------
# LayerNorm (torch custom-LN semantics: unbiased std (ddof=1), eps added to
# std, NOT torch.nn.LayerNorm).  Exact divide (see perf-review note).
# ----------------------------------------------------------------------------
def _layer_norm(x, alpha, bias):
    mean = jnp.mean(x, axis=-1, keepdims=True)
    var = jnp.sum((x - mean) ** 2, axis=-1, keepdims=True) / (x.shape[-1] - 1)
    std = jnp.sqrt(var)
    return alpha * (x - mean) / (std + EPS) + bias


# ----------------------------------------------------------------------------
# Fused kernel: all encoder blocks + final LayerNorm.
# grid = (num_batch_blocks, num_layers); one (Bb, S, D) batch block per
# "parallel" step, layers on the trailing "arbitrary" axis.
# ----------------------------------------------------------------------------
def _encoder_kernel(x_ref, maskb_ref,
                    wqkv_ref, wo_ref,
                    w1_ref, b1_ref, w2_ref, b2_ref,
                    ln1_a_ref, ln1_b_ref, ln2_a_ref, ln2_b_ref,
                    fln_a_ref, fln_b_ref,
                    o_ref, act_ref, heads_ref, *, num_heads):
    layer = pl.program_id(1)
    num_layers = pl.num_programs(1)

    Bb, S, D = x_ref.shape
    d_k = D // num_heads

    # Activation scratch persists across the layer axis; load x at l == 0.
    @pl.when(layer == 0)
    def _():
        for b in range(Bb):
            act_ref[b * S:(b + 1) * S, :] = x_ref[b].astype(jnp.float32)

    act = act_ref[...]                               # (Bb*S, D) f32

    # ----- residual connection 1: act + MHA(LN(act)) -----
    xn = _layer_norm(act, ln1_a_ref[0], ln1_b_ref[0]).astype(jnp.bfloat16)
    # fused QKV projection: one (Bb*S, D) @ (D, 3D) matmul; the 1/sqrt(d_k)
    # scale is already folded into the wq third of wqkv on the host.
    qkv = jnp.dot(xn, wqkv_ref[0],
                  preferred_element_type=jnp.float32).astype(jnp.bfloat16)

    # TODO(synk): for production S (>=512) add a query-tile axis with
    # online-softmax (flash) accumulation so the (S, S) scores never live
    # whole in VMEM (mandatory on v7x's 64 MiB).
    for b in range(Bb):                              # static, small Bb
        r0 = b * S
        bias = maskb_ref[b]                          # (1, S) additive mask bias
        for h in range(num_heads):                   # static, small H
            lo = h * d_k
            qh = qkv[r0:r0 + S, lo:lo + d_k]
            kh = qkv[r0:r0 + S, D + lo:D + lo + d_k]
            vh = qkv[r0:r0 + S, 2 * D + lo:2 * D + lo + d_k]
            # q @ k^T without an explicit transpose (contract last dims)
            scores = lax.dot_general(qh, kh, (((1,), (1,)), ((), ())),
                                     preferred_element_type=jnp.float32)
            scores = scores + bias                   # masked_fill(mask==0, -1e9)
            scores = scores - jnp.max(scores, axis=-1, keepdims=True)
            e = jnp.exp(scores)
            p = e * pl.reciprocal(jnp.sum(e, axis=-1, keepdims=True), approx=True)
            head = jnp.dot(p.astype(jnp.bfloat16), vh,
                           preferred_element_type=jnp.float32)   # (S, d_k)
            # write the head into its lane slice of the concat scratch
            heads_ref[r0:r0 + S, lo:lo + d_k] = head

    # single K = D output projection over the concatenated heads
    attn = jnp.dot(heads_ref[...].astype(jnp.bfloat16), wo_ref[0],
                   preferred_element_type=jnp.float32)
    act = act + attn
    # TODO(synk): dropout is a no-op (eval-mode semantics).

    # ----- residual connection 2: act + FFN(LN(act)) -----
    xn2 = _layer_norm(act, ln2_a_ref[0], ln2_b_ref[0]).astype(jnp.bfloat16)
    h1 = jnp.dot(xn2, w1_ref[0], preferred_element_type=jnp.float32) + b1_ref[0]
    h1 = jnp.maximum(h1, 0.0).astype(jnp.bfloat16)
    ff = jnp.dot(h1, w2_ref[0], preferred_element_type=jnp.float32) + b2_ref[0]
    act = act + ff

    act_ref[...] = act

    # Final LayerNorm fused into the last layer step (no extra pallas_call).
    @pl.when(layer == num_layers - 1)
    def _():
        out = _layer_norm(act, fln_a_ref[...], fln_b_ref[...])
        for b in range(Bb):
            o_ref[b] = out[b * S:(b + 1) * S, :].astype(o_ref.dtype)


# ----------------------------------------------------------------------------
# Wrapper: single pallas_call over grid (B // Bb, L) with stacked weights.
# ----------------------------------------------------------------------------
def encoder_forward(x, mask, stacked, final_params, num_heads, *, block_b=None):
    B, S, D = x.shape
    L, _, F = stacked["w1"].shape
    d_k = D // num_heads
    scale = 1.0 / math.sqrt(d_k)

    # batch block: largest divisor of B up to 8 (weight-DMA reuse vs VMEM).
    if block_b is None:
        block_b = max(bb for bb in range(1, min(B, 8) + 1) if B % bb == 0)
    assert B % block_b == 0
    nb = B // block_b

    # Host-side precompute (one-time): fused QKV weights with the 1/sqrt(d_k)
    # scale folded into Wq, and the additive attention-mask bias.
    wqkv = jnp.concatenate(
        [stacked["wq"].astype(jnp.float32) * scale,
         stacked["wk"].astype(jnp.float32),
         stacked["wv"].astype(jnp.float32)], axis=-1).astype(jnp.bfloat16)
    mask_bias = jnp.where(mask == 0.0, -1e9, 0.0).astype(jnp.float32)  # (B,1,S)

    kernel = functools.partial(_encoder_kernel, num_heads=num_heads)

    def layer_spec(shape):
        nd = len(shape)
        return pl.BlockSpec((1,) + shape[1:], lambda b, l: (l,) + (0,) * (nd - 1))

    def batch_spec(shape):
        return pl.BlockSpec((block_b,) + shape[1:], lambda b, l: (b, 0, 0))

    def full_spec(shape):
        nd = len(shape)
        return pl.BlockSpec(shape, lambda b, l: (0,) * nd)

    return pl.pallas_call(
        kernel,
        out_shape=jax.ShapeDtypeStruct((B, S, D), x.dtype),
        grid=(nb, L),
        in_specs=[
            batch_spec((B, S, D)),            # x
            batch_spec((B, 1, S)),            # additive mask bias
            layer_spec((L, D, 3 * D)),        # fused wq|wk|wv (bf16, wq pre-scaled)
            layer_spec((L, D, D)),            # wo (bf16)
            layer_spec((L, D, F)),            # w1 (bf16)
            layer_spec((L, 1, F)),            # b1
            layer_spec((L, F, D)),            # w2 (bf16)
            layer_spec((L, 1, D)),            # b2
            layer_spec((L, 1, D)),            # ln1 alpha
            layer_spec((L, 1, D)),            # ln1 bias
            layer_spec((L, 1, D)),            # ln2 alpha
            layer_spec((L, 1, D)),            # ln2 bias
            full_spec((1, D)),                # final LN alpha
            full_spec((1, D)),                # final LN bias
        ],
        out_specs=pl.BlockSpec((block_b, S, D), lambda b, l: (b, 0, 0)),
        scratch_shapes=[
            pltpu.VMEM((block_b * S, D), jnp.float32),   # resident activation
            pltpu.VMEM((block_b * S, D), jnp.float32),   # head-concat buffer
        ],
        compiler_params=pltpu.CompilerParams(
            dimension_semantics=("parallel", "arbitrary"),
            # TODO(synk): re-derive per chip: raise toward 64-96 MiB on
            # v5e/v6e (128 MiB physical) for bigger Bb / deeper buffering;
            # on v7x (64 MiB physical) keep >=16 MiB headroom and split the
            # FFN weights along F if D/F grow.
            vmem_limit_bytes=48 * 1024 * 1024),
    )(x, mask_bias,
      wqkv, stacked["wo"],
      stacked["w1"], stacked["b1"], stacked["w2"], stacked["b2"],
      stacked["ln1_a"], stacked["ln1_b"], stacked["ln2_a"], stacked["ln2_b"],
      final_params["alpha"], final_params["bias"])


# ----------------------------------------------------------------------------
# Deterministic parameter construction (synthetic; attention projections
# bias-free as in the reference repo, FFN linears carry biases).
# Matmul weights bf16 (stacked over layers); LN params / biases f32.
# ----------------------------------------------------------------------------
def init_params(key, num_layers, d_model, d_ff):
    layers = []
    for l in range(num_layers):
        ks = jax.random.split(jax.random.fold_in(key, l), 8)
        layers.append(dict(
            wq=(0.05 * jax.random.normal(ks[0], (d_model, d_model), jnp.float32)).astype(jnp.bfloat16),
            wk=(0.05 * jax.random.normal(ks[1], (d_model, d_model), jnp.float32)).astype(jnp.bfloat16),
            wv=(0.05 * jax.random.normal(ks[2], (d_model, d_model), jnp.float32)).astype(jnp.bfloat16),
            wo=(0.05 * jax.random.normal(ks[3], (d_model, d_model), jnp.float32)).astype(jnp.bfloat16),
            w1=(0.05 * jax.random.normal(ks[4], (d_model, d_ff), jnp.float32)).astype(jnp.bfloat16),
            b1=0.05 * jax.random.normal(ks[5], (1, d_ff), jnp.float32),
            w2=(0.05 * jax.random.normal(ks[6], (d_ff, d_model), jnp.float32)).astype(jnp.bfloat16),
            b2=0.05 * jax.random.normal(ks[7], (1, d_model), jnp.float32),
            ln1_a=jnp.ones((1, d_model), jnp.float32),
            ln1_b=jnp.zeros((1, d_model), jnp.float32),
            ln2_a=jnp.ones((1, d_model), jnp.float32),
            ln2_b=jnp.zeros((1, d_model), jnp.float32),
        ))
    stacked = jax.tree_util.tree_map(lambda *xs: jnp.stack(xs, axis=0), *layers)
    final = dict(alpha=jnp.ones((1, d_model), jnp.float32),
                 bias=jnp.zeros((1, d_model), jnp.float32))
    return stacked, final


# ----------------------------------------------------------------------------
# Pure-JAX reference (mirrors the PyTorch module's math, f32) for validation.
# ----------------------------------------------------------------------------
def _layer_norm_ref(x, alpha, bias):
    mean = jnp.mean(x, axis=-1, keepdims=True)
    var = jnp.sum((x - mean) ** 2, axis=-1, keepdims=True) / (x.shape[-1] - 1)
    std = jnp.sqrt(var)
    return alpha * (x - mean) / (std + EPS) + bias


def _ref_encoder(x, mask, stacked, final_params, num_heads):
    B, S, D = x.shape
    d_k = D // num_heads
    L = stacked["wq"].shape[0]
    for l in range(L):
        p = {name: arr[l] for name, arr in stacked.items()}
        wq = p["wq"].astype(jnp.float32); wk = p["wk"].astype(jnp.float32)
        wv = p["wv"].astype(jnp.float32); wo = p["wo"].astype(jnp.float32)
        w1 = p["w1"].astype(jnp.float32); w2 = p["w2"].astype(jnp.float32)
        xn = _layer_norm_ref(x, p["ln1_a"], p["ln1_b"])
        q = (xn @ wq).reshape(B, S, num_heads, d_k).transpose(0, 2, 1, 3)
        k = (xn @ wk).reshape(B, S, num_heads, d_k).transpose(0, 2, 1, 3)
        v = (xn @ wv).reshape(B, S, num_heads, d_k).transpose(0, 2, 1, 3)
        scores = jnp.einsum("bhqd,bhkd->bhqk", q, k) / math.sqrt(d_k)
        scores = jnp.where(mask[:, None, :, :] == 0, -1e9, scores)
        attnw = jax.nn.softmax(scores, axis=-1)
        attn = jnp.einsum("bhqk,bhkd->bhqd", attnw, v).transpose(0, 2, 1, 3).reshape(B, S, D)
        x = x + attn @ wo
        xn2 = _layer_norm_ref(x, p["ln2_a"], p["ln2_b"])
        x = x + (jnp.maximum(xn2 @ w1 + p["b1"], 0.0) @ w2 + p["b2"])
    return _layer_norm_ref(x, final_params["alpha"], final_params["bias"])


if __name__ == "__main__":
    B, S, D, H, F, L = 2, 8, 32, 4, 64, 2

    key = jax.random.PRNGKey(0)
    kx, kp = jax.random.split(key)
    x = jax.random.normal(kx, (B, S, D), jnp.float32)

    # mask: (B, 1, S), 1 for valid positions, 0 for padding
    lengths = jnp.array([S, 5], dtype=jnp.int32)
    mask = (jnp.arange(S)[None, None, :] < lengths[:, None, None]).astype(jnp.float32)

    stacked, final_params = init_params(kp, L, D, F)

    out = encoder_forward(x, mask, stacked, final_params, H)
    out = jax.block_until_ready(out)

    ref = _ref_encoder(x, mask, stacked, final_params, H)
    assert out.shape == (B, S, D)
    # bf16 matmul inputs + approx softmax reciprocal => relaxed tolerance
    assert jnp.allclose(out, ref, rtol=2e-2, atol=2e-2), "mismatch vs JAX reference"

    print("KERNEL_OK")
</pallas_src>

<mosaic_0001>
module attributes {stable_mosaic.version = 11 : i64} {
  func.func @_encoder_kernel(%arg0: i32, %arg1: i32, %arg2: memref<2x8x32xf32, #tpu.memory_space<vmem>>, %arg3: memref<2x1x8xf32, #tpu.memory_space<vmem>>, %arg4: memref<1x32x96xbf16, #tpu.memory_space<vmem>>, %arg5: memref<1x32x32xbf16, #tpu.memory_space<vmem>>, %arg6: memref<1x32x64xbf16, #tpu.memory_space<vmem>>, %arg7: memref<1x1x64xf32, #tpu.memory_space<vmem>>, %arg8: memref<1x64x32xbf16, #tpu.memory_space<vmem>>, %arg9: memref<1x1x32xf32, #tpu.memory_space<vmem>>, %arg10: memref<1x1x32xf32, #tpu.memory_space<vmem>>, %arg11: memref<1x1x32xf32, #tpu.memory_space<vmem>>, %arg12: memref<1x1x32xf32, #tpu.memory_space<vmem>>, %arg13: memref<1x1x32xf32, #tpu.memory_space<vmem>>, %arg14: memref<1x32xf32, #tpu.memory_space<vmem>>, %arg15: memref<1x32xf32, #tpu.memory_space<vmem>>, %arg16: memref<2x8x32xf32, #tpu.memory_space<vmem>>, %arg17: memref<16x32xf32, #tpu.memory_space<vmem>>, %arg18: memref<16x32xf32, #tpu.memory_space<vmem>>) attributes {dimension_semantics = [#tpu.dimension_semantics<parallel>, #tpu.dimension_semantics<arbitrary>], iteration_bounds = array<i64: 1, 2>, scalar_prefetch = 0 : i64, scratch_operands = 2 : i64, tpu.core_type = #tpu.core_type<tc>, window_params = [{transform_indices = @transform_0, window_bounds = array<i64: 2, 8, 32>}, {transform_indices = @transform_1, window_bounds = array<i64: 2, 1, 8>}, {transform_indices = @transform_2, window_bounds = array<i64: 1, 32, 96>}, {transform_indices = @transform_3, window_bounds = array<i64: 1, 32, 32>}, {transform_indices = @transform_4, window_bounds = array<i64: 1, 32, 64>}, {transform_indices = @transform_5, window_bounds = array<i64: 1, 1, 64>}, {transform_indices = @transform_6, window_bounds = array<i64: 1, 64, 32>}, {transform_indices = @transform_7, window_bounds = array<i64: 1, 1, 32>}, {transform_indices = @transform_8, window_bounds = array<i64: 1, 1, 32>}, {transform_indices = @transform_9, window_bounds = array<i64: 1, 1, 32>}, {transform_indices = @transform_10, window_bounds = array<i64: 1, 1, 32>}, {transform_indices = @transform_11, window_bounds = array<i64: 1, 1, 32>}, {pipeline_mode = #tpu.pipeline_mode<synchronous>, transform_indices = @transform_12, window_bounds = array<i64: 1, 32>}, {pipeline_mode = #tpu.pipeline_mode<synchronous>, transform_indices = @transform_13, window_bounds = array<i64: 1, 32>}, {transform_indices = @transform_14, window_bounds = array<i64: 2, 8, 32>}]} {
    %c0_i32 = arith.constant 0 : i32
    %0 = arith.cmpi eq, %arg1, %c0_i32 : i32
    %1 = arith.extui %0 : i1 to i32
    %c0_i32_0 = arith.constant 0 : i32
    %2 = arith.cmpi ne, %1, %c0_i32_0 : i32
    scf.if %2 {
      %c0_101 = arith.constant 0 : index
      %c0_102 = arith.constant 0 : index
      %c0_103 = arith.constant 0 : index
      %246 = vector.load %arg2[%c0_101, %c0_102, %c0_103] : memref<2x8x32xf32, #tpu.memory_space<vmem>>, vector<1x8x32xf32>
      %247 = vector.shape_cast %246 : vector<1x8x32xf32> to vector<8x32xf32>
      %c0_104 = arith.constant 0 : index
      %c0_105 = arith.constant 0 : index
      %248 = vector.load %arg17[%c0_104, %c0_105] : memref<16x32xf32, #tpu.memory_space<vmem>>, vector<8x32xf32>
      tpu.vector_store %arg17[%c0_104, %c0_105], %247 {strides = array<i32>} : memref<16x32xf32, #tpu.memory_space<vmem>>, vector<8x32xf32>,
      %c1_106 = arith.constant 1 : index
      %c0_107 = arith.constant 0 : index
      %c0_108 = arith.constant 0 : index
      %249 = vector.load %arg2[%c1_106, %c0_107, %c0_108] : memref<2x8x32xf32, #tpu.memory_space<vmem>>, vector<1x8x32xf32>
      %250 = vector.shape_cast %249 : vector<1x8x32xf32> to vector<8x32xf32>
      %c8_109 = arith.constant 8 : index
      %c0_110 = arith.constant 0 : index
      %251 = vector.load %arg17[%c8_109, %c0_110] : memref<16x32xf32, #tpu.memory_space<vmem>>, vector<8x32xf32>
      tpu.vector_store %arg17[%c8_109, %c0_110], %250 {strides = array<i32>} : memref<16x32xf32, #tpu.memory_space<vmem>>, vector<8x32xf32>,
    } else {
    }
    %c0 = arith.constant 0 : index
    %c0_1 = arith.constant 0 : index
    %3 = vector.load %arg17[%c0, %c0_1] : memref<16x32xf32, #tpu.memory_space<vmem>>, vector<16x32xf32>
    %c0_2 = arith.constant 0 : index
    %c0_3 = arith.constant 0 : index
    %c0_4 = arith.constant 0 : index
    %4 = vector.load %arg10[%c0_2, %c0_3, %c0_4] : memref<1x1x32xf32, #tpu.memory_space<vmem>>, vector<1x1x32xf32>
    %5 = vector.shape_cast %4 : vector<1x1x32xf32> to vector<1x32xf32>
    %c0_5 = arith.constant 0 : index
    %c0_6 = arith.constant 0 : index
    %c0_7 = arith.constant 0 : index
    %6 = vector.load %arg11[%c0_5, %c0_6, %c0_7] : memref<1x1x32xf32, #tpu.memory_space<vmem>>, vector<1x1x32xf32>
    %7 = vector.shape_cast %6 : vector<1x1x32xf32> to vector<1x32xf32>
    %cst = arith.constant dense<0.000000e+00> : vector<16xf32>
    %8 = vector.multi_reduction <add>, %3, %cst [1] : vector<16x32xf32> to vector<16xf32>
    %9 = vector.shape_cast %8 : vector<16xf32> to vector<16x1xf32>
    %cst_8 = arith.constant 3.200000e+01 : f32
    %10 = vector.broadcast %cst_8 : f32 to vector<16x1xf32>
    %11 = arith.divf %9, %10 : vector<16x1xf32>
    %12 = vector.broadcast %11 : vector<16x1xf32> to vector<16x32xf32>
    %13 = arith.subf %3, %12 : vector<16x32xf32>
    %14 = arith.mulf %13, %13 : vector<16x32xf32>
    %cst_9 = arith.constant dense<0.000000e+00> : vector<16xf32>
    %15 = vector.multi_reduction <add>, %14, %cst_9 [1] : vector<16x32xf32> to vector<16xf32>
    %16 = vector.shape_cast %15 : vector<16xf32> to vector<16x1xf32>
    %cst_10 = arith.constant 3.100000e+01 : f32
    %17 = vector.broadcast %cst_10 : f32 to vector<16x1xf32>
    %18 = arith.divf %16, %17 : vector<16x1xf32>
    %19 = math.sqrt %18 : vector<16x1xf32>
    %20 = vector.broadcast %11 : vector<16x1xf32> to vector<16x32xf32>
    %21 = arith.subf %3, %20 : vector<16x32xf32>
    %22 = vector.broadcast %5 : vector<1x32xf32> to vector<16x32xf32>
    %23 = arith.mulf %22, %21 : vector<16x32xf32>
    %cst_11 = arith.constant 9.99999997E-7 : f32
    %24 = vector.broadcast %cst_11 : f32 to vector<16x1xf32>
    %25 = arith.addf %19, %24 : vector<16x1xf32>
    %26 = vector.broadcast %25 : vector<16x1xf32> to vector<16x32xf32>
    %27 = arith.divf %23, %26 : vector<16x32xf32>
    %28 = vector.broadcast %7 : vector<1x32xf32> to vector<16x32xf32>
    %29 = arith.addf %27, %28 : vector<16x32xf32>
    %30 = arith.truncf %29 : vector<16x32xf32> to vector<16x32xbf16>
    %c0_12 = arith.constant 0 : index
    %c0_13 = arith.constant 0 : index
    %c0_14 = arith.constant 0 : index
    %31 = vector.load %arg4[%c0_12, %c0_13, %c0_14] : memref<1x32x96xbf16, #tpu.memory_space<vmem>>, vector<1x32x96xbf16>
    %32 = vector.shape_cast %31 : vector<1x32x96xbf16> to vector<32x96xbf16>
    %cst_15 = arith.constant dense<0.000000e+00> : vector<16x96xf32>
    %33 = tpu.matmul %30, %32, %cst_15 {dimension_numbers = #tpu.dot_dimension_numbers<[1], [0], [0], [1], [0, 0, 1, 1], [], []>} : vector<16x32xbf16>, vector<32x96xbf16>, vector<16x96xf32> -> vector<16x96xf32>
    %34 = arith.truncf %33 : vector<16x96xf32> to vector<16x96xbf16>
    %c0_16 = arith.constant 0 : index
    %c0_17 = arith.constant 0 : index
    %c0_18 = arith.constant 0 : index
    %35 = vector.load %arg3[%c0_16, %c0_17, %c0_18] : memref<2x1x8xf32, #tpu.memory_space<vmem>>, vector<1x1x8xf32>
    %36 = vector.shape_cast %35 : vector<1x1x8xf32> to vector<1x8xf32>
    %37 = vector.extract_strided_slice %34 {offsets = [0, 0], sizes = [8, 8], strides = [1, 1]} : vector<16x96xbf16> to vector<8x8xbf16>
    %38 = vector.extract_strided_slice %34 {offsets = [0, 32], sizes = [8, 8], strides = [1, 1]} : vector<16x96xbf16> to vector<8x8xbf16>
    %39 = vector.extract_strided_slice %34 {offsets = [0, 64], sizes = [8, 8], strides = [1, 1]} : vector<16x96xbf16> to vector<8x8xbf16>
    %cst_19 = arith.constant dense<0.000000e+00> : vector<8x8xf32>
    %40 = tpu.matmul %37, %38, %cst_19 {dimension_numbers = #tpu.dot_dimension_numbers<[1], [1], [0], [0], [0, 0, 1, 0], [], []>} : vector<8x8xbf16>, vector<8x8xbf16>, vector<8x8xf32> -> vector<8x8xf32>
    %41 = vector.broadcast %36 : vector<1x8xf32> to vector<8x8xf32>
    %42 = arith.addf %40, %41 : vector<8x8xf32>
    %cst_20 = arith.constant dense<0xFF800000> : vector<8xf32>
    %43 = vector.multi_reduction <maximumf>, %42, %cst_20 [1] : vector<8x8xf32> to vector<8xf32>
    %44 = vector.shape_cast %43 : vector<8xf32> to vector<8x1xf32>
    %45 = vector.broadcast %44 : vector<8x1xf32> to vector<8x8xf32>
    %46 = arith.subf %42, %45 : vector<8x8xf32>
    %47 = math.exp %46 : vector<8x8xf32>
    %cst_21 = arith.constant dense<0.000000e+00> : vector<8xf32>
    %48 = vector.multi_reduction <add>, %47, %cst_21 [1] : vector<8x8xf32> to vector<8xf32>
    %49 = vector.shape_cast %48 : vector<8xf32> to vector<8x1xf32>
    %50 = tpu.reciprocal %49 {approx = true} : vector<8x1xf32> -> vector<8x1xf32>
    %51 = vector.broadcast %50 : vector<8x1xf32> to vector<8x8xf32>
    %52 = arith.mulf %47, %51 : vector<8x8xf32>
    %53 = arith.truncf %52 : vector<8x8xf32> to vector<8x8xbf16>
    %cst_22 = arith.constant dense<0.000000e+00> : vector<8x8xf32>
    %54 = tpu.matmul %53, %39, %cst_22 {dimension_numbers = #tpu.dot_dimension_numbers<[1], [0], [0], [1], [0, 0, 1, 1], [], []>} : vector<8x8xbf16>, vector<8x8xbf16>, vector<8x8xf32> -> vector<8x8xf32>
    %c0_23 = arith.constant 0 : index
    %c0_24 = arith.constant 0 : index
    %55 = vector.load %arg18[%c0_23, %c0_24] : memref<16x32xf32, #tpu.memory_space<vmem>>, vector<8x8xf32>
    tpu.vector_store %arg18[%c0_23, %c0_24], %54 {strides = array<i32>} : memref<16x32xf32, #tpu.memory_space<vmem>>, vector<8x8xf32>,
    %56 = vector.extract_strided_slice %34 {offsets = [0, 8], sizes = [8, 8], strides = [1, 1]} : vector<16x96xbf16> to vector<8x8xbf16>
    %57 = vector.extract_strided_slice %34 {offsets = [0, 40], sizes = [8, 8], strides = [1, 1]} : vector<16x96xbf16> to vector<8x8xbf16>
    %58 = vector.extract_strided_slice %34 {offsets = [0, 72], sizes = [8, 8], strides = [1, 1]} : vector<16x96xbf16> to vector<8x8xbf16>
    %cst_25 = arith.constant dense<0.000000e+00> : vector<8x8xf32>
    %59 = tpu.matmul %56, %57, %cst_25 {dimension_numbers = #tpu.dot_dimension_numbers<[1], [1], [0], [0], [0, 0, 1, 0], [], []>} : vector<8x8xbf16>, vector<8x8xbf16>, vector<8x8xf32> -> vector<8x8xf32>
    %60 = vector.broadcast %36 : vector<1x8xf32> to vector<8x8xf32>
    %61 = arith.addf %59, %60 : vector<8x8xf32>
    %cst_26 = arith.constant dense<0xFF800000> : vector<8xf32>
    %62 = vector.multi_reduction <maximumf>, %61, %cst_26 [1] : vector<8x8xf32> to vector<8xf32>
    %63 = vector.shape_cast %62 : vector<8xf32> to vector<8x1xf32>
    %64 = vector.broadcast %63 : vector<8x1xf32> to vector<8x8xf32>
    %65 = arith.subf %61, %64 : vector<8x8xf32>
    %66 = math.exp %65 : vector<8x8xf32>
    %cst_27 = arith.constant dense<0.000000e+00> : vector<8xf32>
    %67 = vector.multi_reduction <add>, %66, %cst_27 [1] : vector<8x8xf32> to vector<8xf32>
    %68 = vector.shape_cast %67 : vector<8xf32> to vector<8x1xf32>
    %69 = tpu.reciprocal %68 {approx = true} : vector<8x1xf32> -> vector<8x1xf32>
    %70 = vector.broadcast %69 : vector<8x1xf32> to vector<8x8xf32>
    %71 = arith.mulf %66, %70 : vector<8x8xf32>
    %72 = arith.truncf %71 : vector<8x8xf32> to vector<8x8xbf16>
    %cst_28 = arith.constant dense<0.000000e+00> : vector<8x8xf32>
    %73 = tpu.matmul %72, %58, %cst_28 {dimension_numbers = #tpu.dot_dimension_numbers<[1], [0], [0], [1], [0, 0, 1, 1], [], []>} : vector<8x8xbf16>, vector<8x8xbf16>, vector<8x8xf32> -> vector<8x8xf32>
    %c0_29 = arith.constant 0 : index
    %c8 = arith.constant 8 : index
    %74 = vector.load %arg18[%c0_29, %c8] : memref<16x32xf32, #tpu.memory_space<vmem>>, vector<8x8xf32>
    tpu.vector_store %arg18[%c0_29, %c8], %73 {strides = array<i32>} : memref<16x32xf32, #tpu.memory_space<vmem>>, vector<8x8xf32>,
    %75 = vector.extract_strided_slice %34 {offsets = [0, 16], sizes = [8, 8], strides = [1, 1]} : vector<16x96xbf16> to vector<8x8xbf16>
    %76 = vector.extract_strided_slice %34 {offsets = [0, 48], sizes = [8, 8], strides = [1, 1]} : vector<16x96xbf16> to vector<8x8xbf16>
    %77 = vector.extract_strided_slice %34 {offsets = [0, 80], sizes = [8, 8], strides = [1, 1]} : vector<16x96xbf16> to vector<8x8xbf16>
    %cst_30 = arith.constant dense<0.000000e+00> : vector<8x8xf32>
    %78 = tpu.matmul %75, %76, %cst_30 {dimension_numbers = #tpu.dot_dimension_numbers<[1], [1], [0], [0], [0, 0, 1, 0], [], []>} : vector<8x8xbf16>, vector<8x8xbf16>, vector<8x8xf32> -> vector<8x8xf32>
    %79 = vector.broadcast %36 : vector<1x8xf32> to vector<8x8xf32>
    %80 = arith.addf %78, %79 : vector<8x8xf32>
    %cst_31 = arith.constant dense<0xFF800000> : vector<8xf32>
    %81 = vector.multi_reduction <maximumf>, %80, %cst_31 [1] : vector<8x8xf32> to vector<8xf32>
    %82 = vector.shape_cast %81 : vector<8xf32> to vector<8x1xf32>
    %83 = vector.broadcast %82 : vector<8x1xf32> to vector<8x8xf32>
    %84 = arith.subf %80, %83 : vector<8x8xf32>
    %85 = math.exp %84 : vector<8x8xf32>
    %cst_32 = arith.constant dense<0.000000e+00> : vector<8xf32>
    %86 = vector.multi_reduction <add>, %85, %cst_32 [1] : vector<8x8xf32> to vector<8xf32>
    %87 = vector.shape_cast %86 : vector<8xf32> to vector<8x1xf32>
    %88 = tpu.reciprocal %87 {approx = true} : vector<8x1xf32> -> vector<8x1xf32>
    %89 = vector.broadcast %88 : vector<8x1xf32> to vector<8x8xf32>
    %90 = arith.mulf %85, %89 : vector<8x8xf32>
    %91 = arith.truncf %90 : vector<8x8xf32> to vector<8x8xbf16>
    %cst_33 = arith.constant dense<0.000000e+00> : vector<8x8xf32>
    %92 = tpu.matmul %91, %77, %cst_33 {dimension_numbers = #tpu.dot_dimension_numbers<[1], [0], [0], [1], [0, 0, 1, 1], [], []>} : vector<8x8xbf16>, vector<8x8xbf16>, vector<8x8xf32> -> vector<8x8xf32>
    %c0_34 = arith.constant 0 : index
    %c16 = arith.constant 16 : index
    %93 = vector.load %arg18[%c0_34, %c16] : memref<16x32xf32, #tpu.memory_space<vmem>>, vector<8x8xf32>
    tpu.vector_store %arg18[%c0_34, %c16], %92 {strides = array<i32>} : memref<16x32xf32, #tpu.memory_space<vmem>>, vector<8x8xf32>,
    %94 = vector.extract_strided_slice %34 {offsets = [0, 24], sizes = [8, 8], strides = [1, 1]} : vector<16x96xbf16> to vector<8x8xbf16>
    %95 = vector.extract_strided_slice %34 {offsets = [0, 56], sizes = [8, 8], strides = [1, 1]} : vector<16x96xbf16> to vector<8x8xbf16>
    %96 = vector.extract_strided_slice %34 {offsets = [0, 88], sizes = [8, 8], strides = [1, 1]} : vector<16x96xbf16> to vector<8x8xbf16>
    %cst_35 = arith.constant dense<0.000000e+00> : vector<8x8xf32>
    %97 = tpu.matmul %94, %95, %cst_35 {dimension_numbers = #tpu.dot_dimension_numbers<[1], [1], [0], [0], [0, 0, 1, 0], [], []>} : vector<8x8xbf16>, vector<8x8xbf16>, vector<8x8xf32> -> vector<8x8xf32>
    %98 = vector.broadcast %36 : vector<1x8xf32> to vector<8x8xf32>
    %99 = arith.addf %97, %98 : vector<8x8xf32>
    %cst_36 = arith.constant dense<0xFF800000> : vector<8xf32>
    %100 = vector.multi_reduction <maximumf>, %99, %cst_36 [1] : vector<8x8xf32> to vector<8xf32>
    %101 = vector.shape_cast %100 : vector<8xf32> to vector<8x1xf32>
    %102 = vector.broadcast %101 : vector<8x1xf32> to vector<8x8xf32>
    %103 = arith.subf %99, %102 : vector<8x8xf32>
    %104 = math.exp %103 : vector<8x8xf32>
    %cst_37 = arith.constant dense<0.000000e+00> : vector<8xf32>
    %105 = vector.multi_reduction <add>, %104, %cst_37 [1] : vector<8x8xf32> to vector<8xf32>
    %106 = vector.shape_cast %105 : vector<8xf32> to vector<8x1xf32>
    %107 = tpu.reciprocal %106 {approx = true} : vector<8x1xf32> -> vector<8x1xf32>
    %108 = vector.broadcast %107 : vector<8x1xf32> to vector<8x8xf32>
    %109 = arith.mulf %104, %108 : vector<8x8xf32>
    %110 = arith.truncf %109 : vector<8x8xf32> to vector<8x8xbf16>
    %cst_38 = arith.constant dense<0.000000e+00> : vector<8x8xf32>
    %111 = tpu.matmul %110, %96, %cst_38 {dimension_numbers = #tpu.dot_dimension_numbers<[1], [0], [0], [1], [0, 0, 1, 1], [], []>} : vector<8x8xbf16>, vector<8x8xbf16>, vector<8x8xf32> -> vector<8x8xf32>
    %c0_39 = arith.constant 0 : index
    %c24 = arith.constant 24 : index
    %112 = vector.load %arg18[%c0_39, %c24] : memref<16x32xf32, #tpu.memory_space<vmem>>, vector<8x8xf32>
    tpu.vector_store %arg18[%c0_39, %c24], %111 {strides = array<i32>} : memref<16x32xf32, #tpu.memory_space<vmem>>, vector<8x8xf32>,
    %c1 = arith.constant 1 : index
    %c0_40 = arith.constant 0 : index
    %c0_41 = arith.constant 0 : index
    %113 = vector.load %arg3[%c1, %c0_40, %c0_41] : memref<2x1x8xf32, #tpu.memory_space<vmem>>, vector<1x1x8xf32>
    %114 = vector.shape_cast %113 : vector<1x1x8xf32> to vector<1x8xf32>
    %115 = vector.extract_strided_slice %34 {offsets = [8, 0], sizes = [8, 8], strides = [1, 1]} : vector<16x96xbf16> to vector<8x8xbf16>
    %116 = vector.extract_strided_slice %34 {offsets = [8, 32], sizes = [8, 8], strides = [1, 1]} : vector<16x96xbf16> to vector<8x8xbf16>
    %117 = vector.extract_strided_slice %34 {offsets = [8, 64], sizes = [8, 8], strides = [1, 1]} : vector<16x96xbf16> to vector<8x8xbf16>
    %cst_42 = arith.constant dense<0.000000e+00> : vector<8x8xf32>
    %118 = tpu.matmul %115, %116, %cst_42 {dimension_numbers = #tpu.dot_dimension_numbers<[1], [1], [0], [0], [0, 0, 1, 0], [], []>} : vector<8x8xbf16>, vector<8x8xbf16>, vector<8x8xf32> -> vector<8x8xf32>
    %119 = vector.broadcast %114 : vector<1x8xf32> to vector<8x8xf32>
    %120 = arith.addf %118, %119 : vector<8x8xf32>
    %cst_43 = arith.constant dense<0xFF800000> : vector<8xf32>
    %121 = vector.multi_reduction <maximumf>, %120, %cst_43 [1] : vector<8x8xf32> to vector<8xf32>
    %122 = vector.shape_cast %121 : vector<8xf32> to vector<8x1xf32>
    %123 = vector.broadcast %122 : vector<8x1xf32> to vector<8x8xf32>
    %124 = arith.subf %120, %123 : vector<8x8xf32>
    %125 = math.exp %124 : vector<8x8xf32>
    %cst_44 = arith.constant dense<0.000000e+00> : vector<8xf32>
    %126 = vector.multi_reduction <add>, %125, %cst_44 [1] : vector<8x8xf32> to vector<8xf32>
    %127 = vector.shape_cast %126 : vector<8xf32> to vector<8x1xf32>
    %128 = tpu.reciprocal %127 {approx = true} : vector<8x1xf32> -> vector<8x1xf32>
    %129 = vector.broadcast %128 : vector<8x1xf32> to vector<8x8xf32>
    %130 = arith.mulf %125, %129 : vector<8x8xf32>
    %131 = arith.truncf %130 : vector<8x8xf32> to vector<8x8xbf16>
    %cst_45 = arith.constant dense<0.000000e+00> : vector<8x8xf32>
    %132 = tpu.matmul %131, %117, %cst_45 {dimension_numbers = #tpu.dot_dimension_numbers<[1], [0], [0], [1], [0, 0, 1, 1], [], []>} : vector<8x8xbf16>, vector<8x8xbf16>, vector<8x8xf32> -> vector<8x8xf32>
    %c8_46 = arith.constant 8 : index
    %c0_47 = arith.constant 0 : index
    %133 = vector.load %arg18[%c8_46, %c0_47] : memref<16x32xf32, #tpu.memory_space<vmem>>, vector<8x8xf32>
    tpu.vector_store %arg18[%c8_46, %c0_47], %132 {strides = array<i32>} : memref<16x32xf32, #tpu.memory_space<vmem>>, vector<8x8xf32>,
    %134 = vector.extract_strided_slice %34 {offsets = [8, 8], sizes = [8, 8], strides = [1, 1]} : vector<16x96xbf16> to vector<8x8xbf16>
    %135 = vector.extract_strided_slice %34 {offsets = [8, 40], sizes = [8, 8], strides = [1, 1]} : vector<16x96xbf16> to vector<8x8xbf16>
    %136 = vector.extract_strided_slice %34 {offsets = [8, 72], sizes = [8, 8], strides = [1, 1]} : vector<16x96xbf16> to vector<8x8xbf16>
    %cst_48 = arith.constant dense<0.000000e+00> : vector<8x8xf32>
    %137 = tpu.matmul %134, %135, %cst_48 {dimension_numbers = #tpu.dot_dimension_numbers<[1], [1], [0], [0], [0, 0, 1, 0], [], []>} : vector<8x8xbf16>, vector<8x8xbf16>, vector<8x8xf32> -> vector<8x8xf32>
    %138 = vector.broadcast %114 : vector<1x8xf32> to vector<8x8xf32>
    %139 = arith.addf %137, %138 : vector<8x8xf32>
    %cst_49 = arith.constant dense<0xFF800000> : vector<8xf32>
    %140 = vector.multi_reduction <maximumf>, %139, %cst_49 [1] : vector<8x8xf32> to vector<8xf32>
    %141 = vector.shape_cast %140 : vector<8xf32> to vector<8x1xf32>
    %142 = vector.broadcast %141 : vector<8x1xf32> to vector<8x8xf32>
    %143 = arith.subf %139, %142 : vector<8x8xf32>
    %144 = math.exp %143 : vector<8x8xf32>
    %cst_50 = arith.constant dense<0.000000e+00> : vector<8xf32>
    %145 = vector.multi_reduction <add>, %144, %cst_50 [1] : vector<8x8xf32> to vector<8xf32>
    %146 = vector.shape_cast %145 : vector<8xf32> to vector<8x1xf32>
    %147 = tpu.reciprocal %146 {approx = true} : vector<8x1xf32> -> vector<8x1xf32>
    %148 = vector.broadcast %147 : vector<8x1xf32> to vector<8x8xf32>
    %149 = arith.mulf %144, %148 : vector<8x8xf32>
    %150 = arith.truncf %149 : vector<8x8xf32> to vector<8x8xbf16>
    %cst_51 = arith.constant dense<0.000000e+00> : vector<8x8xf32>
    %151 = tpu.matmul %150, %136, %cst_51 {dimension_numbers = #tpu.dot_dimension_numbers<[1], [0], [0], [1], [0, 0, 1, 1], [], []>} : vector<8x8xbf16>, vector<8x8xbf16>, vector<8x8xf32> -> vector<8x8xf32>
    %c8_52 = arith.constant 8 : index
    %c8_53 = arith.constant 8 : index
    %152 = vector.load %arg18[%c8_52, %c8_53] : memref<16x32xf32, #tpu.memory_space<vmem>>, vector<8x8xf32>
    tpu.vector_store %arg18[%c8_52, %c8_53], %151 {strides = array<i32>} : memref<16x32xf32, #tpu.memory_space<vmem>>, vector<8x8xf32>,
    %153 = vector.extract_strided_slice %34 {offsets = [8, 16], sizes = [8, 8], strides = [1, 1]} : vector<16x96xbf16> to vector<8x8xbf16>
    %154 = vector.extract_strided_slice %34 {offsets = [8, 48], sizes = [8, 8], strides = [1, 1]} : vector<16x96xbf16> to vector<8x8xbf16>
    %155 = vector.extract_strided_slice %34 {offsets = [8, 80], sizes = [8, 8], strides = [1, 1]} : vector<16x96xbf16> to vector<8x8xbf16>
    %cst_54 = arith.constant dense<0.000000e+00> : vector<8x8xf32>
    %156 = tpu.matmul %153, %154, %cst_54 {dimension_numbers = #tpu.dot_dimension_numbers<[1], [1], [0], [0], [0, 0, 1, 0], [], []>} : vector<8x8xbf16>, vector<8x8xbf16>, vector<8x8xf32> -> vector<8x8xf32>
    %157 = vector.broadcast %114 : vector<1x8xf32> to vector<8x8xf32>
    %158 = arith.addf %156, %157 : vector<8x8xf32>
    %cst_55 = arith.constant dense<0xFF800000> : vector<8xf32>
    %159 = vector.multi_reduction <maximumf>, %158, %cst_55 [1] : vector<8x8xf32> to vector<8xf32>
    %160 = vector.shape_cast %159 : vector<8xf32> to vector<8x1xf32>
    %161 = vector.broadcast %160 : vector<8x1xf32> to vector<8x8xf32>
    %162 = arith.subf %158, %161 : vector<8x8xf32>
    %163 = math.exp %162 : vector<8x8xf32>
    %cst_56 = arith.constant dense<0.000000e+00> : vector<8xf32>
    %164 = vector.multi_reduction <add>, %163, %cst_56 [1] : vector<8x8xf32> to vector<8xf32>
    %165 = vector.shape_cast %164 : vector<8xf32> to vector<8x1xf32>
    %166 = tpu.reciprocal %165 {approx = true} : vector<8x1xf32> -> vector<8x1xf32>
    %167 = vector.broadcast %166 : vector<8x1xf32> to vector<8x8xf32>
    %168 = arith.mulf %163, %167 : vector<8x8xf32>
    %169 = arith.truncf %168 : vector<8x8xf32> to vector<8x8xbf16>
    %cst_57 = arith.constant dense<0.000000e+00> : vector<8x8xf32>
    %170 = tpu.matmul %169, %155, %cst_57 {dimension_numbers = #tpu.dot_dimension_numbers<[1], [0], [0], [1], [0, 0, 1, 1], [], []>} : vector<8x8xbf16>, vector<8x8xbf16>, vector<8x8xf32> -> vector<8x8xf32>
    %c8_58 = arith.constant 8 : index
    %c16_59 = arith.constant 16 : index
    %171 = vector.load %arg18[%c8_58, %c16_59] : memref<16x32xf32, #tpu.memory_space<vmem>>, vector<8x8xf32>
    tpu.vector_store %arg18[%c8_58, %c16_59], %170 {strides = array<i32>} : memref<16x32xf32, #tpu.memory_space<vmem>>, vector<8x8xf32>,
    %172 = vector.extract_strided_slice %34 {offsets = [8, 24], sizes = [8, 8], strides = [1, 1]} : vector<16x96xbf16> to vector<8x8xbf16>
    %173 = vector.extract_strided_slice %34 {offsets = [8, 56], sizes = [8, 8], strides = [1, 1]} : vector<16x96xbf16> to vector<8x8xbf16>
    %174 = vector.extract_strided_slice %34 {offsets = [8, 88], sizes = [8, 8], strides = [1, 1]} : vector<16x96xbf16> to vector<8x8xbf16>
    %cst_60 = arith.constant dense<0.000000e+00> : vector<8x8xf32>
    %175 = tpu.matmul %172, %173, %cst_60 {dimension_numbers = #tpu.dot_dimension_numbers<[1], [1], [0], [0], [0, 0, 1, 0], [], []>} : vector<8x8xbf16>, vector<8x8xbf16>, vector<8x8xf32> -> vector<8x8xf32>
    %176 = vector.broadcast %114 : vector<1x8xf32> to vector<8x8xf32>
    %177 = arith.addf %175, %176 : vector<8x8xf32>
    %cst_61 = arith.constant dense<0xFF800000> : vector<8xf32>
    %178 = vector.multi_reduction <maximumf>, %177, %cst_61 [1] : vector<8x8xf32> to vector<8xf32>
    %179 = vector.shape_cast %178 : vector<8xf32> to vector<8x1xf32>
    %180 = vector.broadcast %179 : vector<8x1xf32> to vector<8x8xf32>
    %181 = arith.subf %177, %180 : vector<8x8xf32>
    %182 = math.exp %181 : vector<8x8xf32>
    %cst_62 = arith.constant dense<0.000000e+00> : vector<8xf32>
    %183 = vector.multi_reduction <add>, %182, %cst_62 [1] : vector<8x8xf32> to vector<8xf32>
    %184 = vector.shape_cast %183 : vector<8xf32> to vector<8x1xf32>
    %185 = tpu.reciprocal %184 {approx = true} : vector<8x1xf32> -> vector<8x1xf32>
    %186 = vector.broadcast %185 : vector<8x1xf32> to vector<8x8xf32>
    %187 = arith.mulf %182, %186 : vector<8x8xf32>
    %188 = arith.truncf %187 : vector<8x8xf32> to vector<8x8xbf16>
    %cst_63 = arith.constant dense<0.000000e+00> : vector<8x8xf32>
    %189 = tpu.matmul %188, %174, %cst_63 {dimension_numbers = #tpu.dot_dimension_numbers<[1], [0], [0], [1], [0, 0, 1, 1], [], []>} : vector<8x8xbf16>, vector<8x8xbf16>, vector<8x8xf32> -> vector<8x8xf32>
    %c8_64 = arith.constant 8 : index
    %c24_65 = arith.constant 24 : index
    %190 = vector.load %arg18[%c8_64, %c24_65] : memref<16x32xf32, #tpu.memory_space<vmem>>, vector<8x8xf32>
    tpu.vector_store %arg18[%c8_64, %c24_65], %189 {strides = array<i32>} : memref<16x32xf32, #tpu.memory_space<vmem>>, vector<8x8xf32>,
    %c0_66 = arith.constant 0 : index
    %c0_67 = arith.constant 0 : index
    %191 = vector.load %arg18[%c0_66, %c0_67] : memref<16x32xf32, #tpu.memory_space<vmem>>, vector<16x32xf32>
    %192 = arith.truncf %191 : vector<16x32xf32> to vector<16x32xbf16>
    %c0_68 = arith.constant 0 : index
    %c0_69 = arith.constant 0 : index
    %c0_70 = arith.constant 0 : index
    %193 = vector.load %arg5[%c0_68, %c0_69, %c0_70] : memref<1x32x32xbf16, #tpu.memory_space<vmem>>, vector<1x32x32xbf16>
    %194 = vector.shape_cast %193 : vector<1x32x32xbf16> to vector<32x32xbf16>
    %cst_71 = arith.constant dense<0.000000e+00> : vector<16x32xf32>
    %195 = tpu.matmul %192, %194, %cst_71 {dimension_numbers = #tpu.dot_dimension_numbers<[1], [0], [0], [1], [0, 0, 1, 1], [], []>} : vector<16x32xbf16>, vector<32x32xbf16>, vector<16x32xf32> -> vector<16x32xf32>
    %196 = arith.addf %3, %195 : vector<16x32xf32>
    %c0_72 = arith.constant 0 : index
    %c0_73 = arith.constant 0 : index
    %c0_74 = arith.constant 0 : index
    %197 = vector.load %arg12[%c0_72, %c0_73, %c0_74] : memref<1x1x32xf32, #tpu.memory_space<vmem>>, vector<1x1x32xf32>
    %198 = vector.shape_cast %197 : vector<1x1x32xf32> to vector<1x32xf32>
    %c0_75 = arith.constant 0 : index
    %c0_76 = arith.constant 0 : index
    %c0_77 = arith.constant 0 : index
    %199 = vector.load %arg13[%c0_75, %c0_76, %c0_77] : memref<1x1x32xf32, #tpu.memory_space<vmem>>, vector<1x1x32xf32>
    %200 = vector.shape_cast %199 : vector<1x1x32xf32> to vector<1x32xf32>
    %cst_78 = arith.constant dense<0.000000e+00> : vector<16xf32>
    %201 = vector.multi_reduction <add>, %196, %cst_78 [1] : vector<16x32xf32> to vector<16xf32>
    %202 = vector.shape_cast %201 : vector<16xf32> to vector<16x1xf32>
    %cst_79 = arith.constant 3.200000e+01 : f32
    %203 = vector.broadcast %cst_79 : f32 to vector<16x1xf32>
    %204 = arith.divf %202, %203 : vector<16x1xf32>
    %205 = vector.broadcast %204 : vector<16x1xf32> to vector<16x32xf32>
    %206 = arith.subf %196, %205 : vector<16x32xf32>
    %207 = arith.mulf %206, %206 : vector<16x32xf32>
    %cst_80 = arith.constant dense<0.000000e+00> : vector<16xf32>
    %208 = vector.multi_reduction <add>, %207, %cst_80 [1] : vector<16x32xf32> to vector<16xf32>
    %209 = vector.shape_cast %208 : vector<16xf32> to vector<16x1xf32>
    %cst_81 = arith.constant 3.100000e+01 : f32
    %210 = vector.broadcast %cst_81 : f32 to vector<16x1xf32>
    %211 = arith.divf %209, %210 : vector<16x1xf32>
    %212 = math.sqrt %211 : vector<16x1xf32>
    %213 = vector.broadcast %204 : vector<16x1xf32> to vector<16x32xf32>
    %214 = arith.subf %196, %213 : vector<16x32xf32>
    %215 = vector.broadcast %198 : vector<1x32xf32> to vector<16x32xf32>
    %216 = arith.mulf %215, %214 : vector<16x32xf32>
    %cst_82 = arith.constant 9.99999997E-7 : f32
    %217 = vector.broadcast %cst_82 : f32 to vector<16x1xf32>
    %218 = arith.addf %212, %217 : vector<16x1xf32>
    %219 = vector.broadcast %218 : vector<16x1xf32> to vector<16x32xf32>
    %220 = arith.divf %216, %219 : vector<16x32xf32>
    %221 = vector.broadcast %200 : vector<1x32xf32> to vector<16x32xf32>
    %222 = arith.addf %220, %221 : vector<16x32xf32>
    %223 = arith.truncf %222 : vector<16x32xf32> to vector<16x32xbf16>
    %c0_83 = arith.constant 0 : index
    %c0_84 = arith.constant 0 : index
    %c0_85 = arith.constant 0 : index
    %224 = vector.load %arg6[%c0_83, %c0_84, %c0_85] : memref<1x32x64xbf16, #tpu.memory_space<vmem>>, vector<1x32x64xbf16>
    %225 = vector.shape_cast %224 : vector<1x32x64xbf16> to vector<32x64xbf16>
    %cst_86 = arith.constant dense<0.000000e+00> : vector<16x64xf32>
    %226 = tpu.matmul %223, %225, %cst_86 {dimension_numbers = #tpu.dot_dimension_numbers<[1], [0], [0], [1], [0, 0, 1, 1], [], []>} : vector<16x32xbf16>, vector<32x64xbf16>, vector<16x64xf32> -> vector<16x64xf32>
    %c0_87 = arith.constant 0 : index
    %c0_88 = arith.constant 0 : index
    %c0_89 = arith.constant 0 : index
    %227 = vector.load %arg7[%c0_87, %c0_88, %c0_89] : memref<1x1x64xf32, #tpu.memory_space<vmem>>, vector<1x1x64xf32>
    %228 = vector.shape_cast %227 : vector<1x1x64xf32> to vector<1x64xf32>
    %229 = vector.broadcast %228 : vector<1x64xf32> to vector<16x64xf32>
    %230 = arith.addf %226, %229 : vector<16x64xf32>
    %cst_90 = arith.constant 0.000000e+00 : f32
    %231 = vector.broadcast %cst_90 : f32 to vector<16x64xf32>
    %232 = arith.maximumf %230, %231 : vector<16x64xf32>
    %233 = arith.truncf %232 : vector<16x64xf32> to vector<16x64xbf16>
    %c0_91 = arith.constant 0 : index
    %c0_92 = arith.constant 0 : index
    %c0_93 = arith.constant 0 : index
    %234 = vector.load %arg8[%c0_91, %c0_92, %c0_93] : memref<1x64x32xbf16, #tpu.memory_space<vmem>>, vector<1x64x32xbf16>
    %235 = vector.shape_cast %234 : vector<1x64x32xbf16> to vector<64x32xbf16>
    %cst_94 = arith.constant dense<0.000000e+00> : vector<16x32xf32>
    %236 = tpu.matmul %233, %235, %cst_94 {dimension_numbers = #tpu.dot_dimension_numbers<[1], [0], [0], [1], [0, 0, 1, 1], [], []>} : vector<16x64xbf16>, vector<64x32xbf16>, vector<16x32xf32> -> vector<16x32xf32>
    %c0_95 = arith.constant 0 : index
    %c0_96 = arith.constant 0 : index
    %c0_97 = arith.constant 0 : index
    %237 = vector.load %arg9[%c0_95, %c0_96, %c0_97] : memref<1x1x32xf32, #tpu.memory_space<vmem>>, vector<1x1x32xf32>
    %238 = vector.shape_cast %237 : vector<1x1x32xf32> to vector<1x32xf32>
    %239 = vector.broadcast %238 : vector<1x32xf32> to vector<16x32xf32>
    %240 = arith.addf %236, %239 : vector<16x32xf32>
    %241 = arith.addf %196, %240 : vector<16x32xf32>
    %c0_98 = arith.constant 0 : index
    %c0_99 = arith.constant 0 : index
    %242 = vector.load %arg17[%c0_98, %c0_99] : memref<16x32xf32, #tpu.memory_space<vmem>>, vector<16x32xf32>
    tpu.vector_store %arg17[%c0_98, %c0_99], %241 {strides = array<i32>} : memref<16x32xf32, #tpu.memory_space<vmem>>, vector<16x32xf32>,
    %c1_i32 = arith.constant 1 : i32
    %243 = arith.cmpi eq, %arg1, %c1_i32 : i32
    %244 = arith.extui %243 : i1 to i32
    %c0_i32_100 = arith.constant 0 : i32
    %245 = arith.cmpi ne, %244, %c0_i32_100 : i32
    scf.if %245 {
      %c0_101 = arith.constant 0 : index
      %c0_102 = arith.constant 0 : index
      %246 = vector.load %arg14[%c0_101, %c0_102] : memref<1x32xf32, #tpu.memory_space<vmem>>, vector<1x32xf32>
      %c0_103 = arith.constant 0 : index
      %c0_104 = arith.constant 0 : index
      %247 = vector.load %arg15[%c0_103, %c0_104] : memref<1x32xf32, #tpu.memory_space<vmem>>, vector<1x32xf32>
      %cst_105 = arith.constant dense<0.000000e+00> : vector<16xf32>
      %248 = vector.multi_reduction <add>, %241, %cst_105 [1] : vector<16x32xf32> to vector<16xf32>
      %249 = vector.shape_cast %248 : vector<16xf32> to vector<16x1xf32>
      %cst_106 = arith.constant 3.200000e+01 : f32
      %250 = vector.broadcast %cst_106 : f32 to vector<16x1xf32>
      %251 = arith.divf %249, %250 : vector<16x1xf32>
      %252 = vector.broadcast %251 : vector<16x1xf32> to vector<16x32xf32>
      %253 = arith.subf %241, %252 : vector<16x32xf32>
      %254 = arith.mulf %253, %253 : vector<16x32xf32>
      %cst_107 = arith.constant dense<0.000000e+00> : vector<16xf32>
      %255 = vector.multi_reduction <add>, %254, %cst_107 [1] : vector<16x32xf32> to vector<16xf32>
      %256 = vector.shape_cast %255 : vector<16xf32> to vector<16x1xf32>
      %cst_108 = arith.constant 3.100000e+01 : f32
      %257 = vector.broadcast %cst_108 : f32 to vector<16x1xf32>
      %258 = arith.divf %256, %257 : vector<16x1xf32>
      %259 = math.sqrt %258 : vector<16x1xf32>
      %260 = vector.broadcast %251 : vector<16x1xf32> to vector<16x32xf32>
      %261 = arith.subf %241, %260 : vector<16x32xf32>
      %262 = vector.broadcast %246 : vector<1x32xf32> to vector<16x32xf32>
      %263 = arith.mulf %262, %261 : vector<16x32xf32>
      %cst_109 = arith.constant 9.99999997E-7 : f32
      %264 = vector.broadcast %cst_109 : f32 to vector<16x1xf32>
      %265 = arith.addf %259, %264 : vector<16x1xf32>
      %266 = vector.broadcast %265 : vector<16x1xf32> to vector<16x32xf32>
      %267 = arith.divf %263, %266 : vector<16x32xf32>
      %268 = vector.broadcast %247 : vector<1x32xf32> to vector<16x32xf32>
      %269 = arith.addf %267, %268 : vector<16x32xf32>
      %270 = vector.extract_strided_slice %269 {offsets = [0, 0], sizes = [8, 32], strides = [1, 1]} : vector<16x32xf32> to vector<8x32xf32>
      %c0_110 = arith.constant 0 : index
      %c0_111 = arith.constant 0 : index
      %c0_112 = arith.constant 0 : index
      %271 = vector.load %arg16[%c0_110, %c0_111, %c0_112] : memref<2x8x32xf32, #tpu.memory_space<vmem>>, vector<1x8x32xf32>
      %272 = vector.shape_cast %271 : vector<1x8x32xf32> to vector<8x32xf32>
      %273 = vector.shape_cast %270 : vector<8x32xf32> to vector<1x8x32xf32>
      tpu.vector_store %arg16[%c0_110, %c0_111, %c0_112], %273 {strides = array<i32>} : memref<2x8x32xf32, #tpu.memory_space<vmem>>, vector<1x8x32xf32>,
      %274 = vector.extract_strided_slice %269 {offsets = [8, 0], sizes = [8, 32], strides = [1, 1]} : vector<16x32xf32> to vector<8x32xf32>
      %c1_113 = arith.constant 1 : index
      %c0_114 = arith.constant 0 : index
      %c0_115 = arith.constant 0 : index
      %275 = vector.load %arg16[%c1_113, %c0_114, %c0_115] : memref<2x8x32xf32, #tpu.memory_space<vmem>>, vector<1x8x32xf32>
      %276 = vector.shape_cast %275 : vector<1x8x32xf32> to vector<8x32xf32>
      %277 = vector.shape_cast %274 : vector<8x32xf32> to vector<1x8x32xf32>
      tpu.vector_store %arg16[%c1_113, %c0_114, %c0_115], %277 {strides = array<i32>} : memref<2x8x32xf32, #tpu.memory_space<vmem>>, vector<1x8x32xf32>,
    } else {
    }
    return
  }
  func.func @transform_0(%arg0: i32, %arg1: i32) -> (i32, i32, i32) {
    %c0_i32 = arith.constant 0 : i32
    %c0_i32_0 = arith.constant 0 : i32
    %c0_i32_1 = arith.constant 0 : i32
    return %arg0, %c0_i32, %c0_i32_0 : i32, i32, i32
  }
  func.func @transform_1(%arg0: i32, %arg1: i32) -> (i32, i32, i32) {
    %c0_i32 = arith.constant 0 : i32
    %c0_i32_0 = arith.constant 0 : i32
    %c0_i32_1 = arith.constant 0 : i32
    return %arg0, %c0_i32, %c0_i32_0 : i32, i32, i32
  }
  func.func @transform_2(%arg0: i32, %arg1: i32) -> (i32, i32, i32) {
    %c0_i32 = arith.constant 0 : i32
    %c0_i32_0 = arith.constant 0 : i32
    %c0_i32_1 = arith.constant 0 : i32
    return %arg1, %c0_i32, %c0_i32_0 : i32, i32, i32
  }
  func.func @transform_3(%arg0: i32, %arg1: i32) -> (i32, i32, i32) {
    %c0_i32 = arith.constant 0 : i32
    %c0_i32_0 = arith.constant 0 : i32
    %c0_i32_1 = arith.constant 0 : i32
    return %arg1, %c0_i32, %c0_i32_0 : i32, i32, i32
  }
  func.func @transform_4(%arg0: i32, %arg1: i32) -> (i32, i32, i32) {
    %c0_i32 = arith.constant 0 : i32
    %c0_i32_0 = arith.constant 0 : i32
    %c0_i32_1 = arith.constant 0 : i32
    return %arg1, %c0_i32, %c0_i32_0 : i32, i32, i32
  }
  func.func @transform_5(%arg0: i32, %arg1: i32) -> (i32, i32, i32) {
    %c0_i32 = arith.constant 0 : i32
    %c0_i32_0 = arith.constant 0 : i32
    %c0_i32_1 = arith.constant 0 : i32
    return %arg1, %c0_i32, %c0_i32_0 : i32, i32, i32
  }
  func.func @transform_6(%arg0: i32, %arg1: i32) -> (i32, i32, i32) {
    %c0_i32 = arith.constant 0 : i32
    %c0_i32_0 = arith.constant 0 : i32
    %c0_i32_1 = arith.constant 0 : i32
    return %arg1, %c0_i32, %c0_i32_0 : i32, i32, i32
  }
  func.func @transform_7(%arg0: i32, %arg1: i32) -> (i32, i32, i32) {
    %c0_i32 = arith.constant 0 : i32
    %c0_i32_0 = arith.constant 0 : i32
    %c0_i32_1 = arith.constant 0 : i32
    return %arg1, %c0_i32, %c0_i32_0 : i32, i32, i32
  }
  func.func @transform_8(%arg0: i32, %arg1: i32) -> (i32, i32, i32) {
    %c0_i32 = arith.constant 0 : i32
    %c0_i32_0 = arith.constant 0 : i32
    %c0_i32_1 = arith.constant 0 : i32
    return %arg1, %c0_i32, %c0_i32_0 : i32, i32, i32
  }
  func.func @transform_9(%arg0: i32, %arg1: i32) -> (i32, i32, i32) {
    %c0_i32 = arith.constant 0 : i32
    %c0_i32_0 = arith.constant 0 : i32
    %c0_i32_1 = arith.constant 0 : i32
    return %arg1, %c0_i32, %c0_i32_0 : i32, i32, i32
  }
  func.func @transform_10(%arg0: i32, %arg1: i32) -> (i32, i32, i32) {
    %c0_i32 = arith.constant 0 : i32
    %c0_i32_0 = arith.constant 0 : i32
    %c0_i32_1 = arith.constant 0 : i32
    return %arg1, %c0_i32, %c0_i32_0 : i32, i32, i32
  }
  func.func @transform_11(%arg0: i32, %arg1: i32) -> (i32, i32, i32) {
    %c0_i32 = arith.constant 0 : i32
    %c0_i32_0 = arith.constant 0 : i32
    %c0_i32_1 = arith.constant 0 : i32
    return %arg1, %c0_i32, %c0_i32_0 : i32, i32, i32
  }
  func.func @transform_12(%arg0: i32, %arg1: i32) -> (i32, i32) {
    %c0_i32 = arith.constant 0 : i32
    %c0_i32_0 = arith.constant 0 : i32
    %c0_i32_1 = arith.constant 0 : i32
    return %c0_i32, %c0_i32_0 : i32, i32
  }
  func.func @transform_13(%arg0: i32, %arg1: i32) -> (i32, i32) {
    %c0_i32 = arith.constant 0 : i32
    %c0_i32_0 = arith.constant 0 : i32
    %c0_i32_1 = arith.constant 0 : i32
    return %c0_i32, %c0_i32_0 : i32, i32
  }
  func.func @transform_14(%arg0: i32, %arg1: i32) -> (i32, i32, i32) {
    %c0_i32 = arith.constant 0 : i32
    %c0_i32_0 = arith.constant 0 : i32
    %c0_i32_1 = arith.constant 0 : i32
    return %arg0, %c0_i32, %c0_i32_0 : i32, i32, i32
  }
}

</mosaic_0001>

<llo_original>
// kernel: tpu_custom_call.1
$region0: #{tpu_custom_call.1}
  #allocation0 [shape = 'u32[]', space=smem, size = 0x4, offset = 0x4, fixed_abs, tag = 'smem constant byte address 0x4 - core index']
  #allocation1 [shape = 'u32[144,128]{1,0:T(1,128)}', space=vmem, size = 0x12000, scoped, tag = 'internal scratch']
  #allocation2 [shape = 'f32[16,32]{1,0:T(8,128)}', space=vmem, size = 0x2000, scoped, tag = 'scratch operand']
  #allocation3 [shape = 'f32[16,32]{1,0:T(8,128)}', space=vmem, size = 0x2000, scoped, tag = 'scratch operand']
  %s0 = inlined_call_operand.hbm [shape: f32[2,8,32], index: 0, kind: input, shape index: {}]
  %s1 = inlined_call_operand.vmem [shape: f32[2,1,8], index: 1, kind: input, shape index: {}]
  %s2 = inlined_call_operand.vmem [shape: bf16[2,32,96], index: 2, kind: input, shape index: {}]
  %s3 = inlined_call_operand.vmem [shape: bf16[2,32,32], index: 3, kind: input, shape index: {}]
  %s4 = inlined_call_operand.vmem [shape: bf16[2,32,64], index: 4, kind: input, shape index: {}]
  %s5 = inlined_call_operand.vmem [shape: f32[2,1,64], index: 5, kind: input, shape index: {}]
  %s6 = inlined_call_operand.vmem [shape: bf16[2,64,32], index: 6, kind: input, shape index: {}]
  %s7 = inlined_call_operand.vmem [shape: f32[2,1,32], index: 7, kind: input, shape index: {}]
  %s8 = inlined_call_operand.vmem [shape: f32[2,1,32], index: 8, kind: input, shape index: {}]
  %s9 = inlined_call_operand.vmem [shape: f32[2,1,32], index: 9, kind: input, shape index: {}]
  %s10 = inlined_call_operand.vmem [shape: f32[2,1,32], index: 10, kind: input, shape index: {}]
  %s11 = inlined_call_operand.vmem [shape: f32[2,1,32], index: 11, kind: input, shape index: {}]
  %s12 = inlined_call_operand.vmem [shape: f32[1,32], index: 12, kind: input, shape index: {}]
  %s13 = inlined_call_operand.vmem [shape: f32[1,32], index: 13, kind: input, shape index: {}]
  %s14 = inlined_call_operand.hbm [shape: f32[2,8,32], index: 14, kind: output, shape index: {}]
  %s15 = sld [smem:[#allocation0]]
  $region101: #{tpu_custom_call.1} parent=0
    _
  %s17 = ssub.s32 1, %s15
  %s18 = scalar_select 0, %s17, %s15
  $region1: #{tpu_custom_call.1} parent=0
    #allocation4 [shape = 'u8[8192]{0}', space=vmem, size = 0x2000, scoped, tag = 'input window, operand 0, single buffered']
    #allocation5 [shape = 's32[2]{0}', space=sflag, size = 0x8, scoped, tag = 'scoped memory for tpu_custom_call.1']
    #allocation6 [shape = 's32[2]{0}', space=sflag, size = 0x8, scoped, tag = 'scoped memory for tpu_custom_call.1']
    #allocation7 [shape = 'u8[8192]{0}', space=vmem, size = 0x2000, scoped, tag = 'output window, operand 0, single buffered']
    %19 = vsyncpa [#allocation5], 0
    %20 = vsyncpa [#allocation6], 0
    loop: start=0, step=1, limit=4
    $region2: #{tpu_custom_call.1} parent=1 // loop_pre_header
      _
    $region3: #{tpu_custom_call.1} parent=1 // loop_header
      %s22 = sphi 0, %s26
      %p23 = scmp.ge.s32.totalorder %s22, 4
      %s29 = sphi 0, %s41
      %s30 = sphi 0, %s37
      %s31 = sphi 0, %s29
      %s32 = sphi 0, %s30
      %s33 = sphi 0, %s31
      %s34 = sphi 0, %s32
      %s44 = sphi 0, %s46
      %s47 = sphi 0, %s44
      %s48 = sphi 0, %s47
      %s64 = sphi 0, %s48
      %s70 = sphi 0, %s72
      %s73 = sphi 0, %s70
      %s74 = sphi 0, %s73
      %s90 = sphi 0, %s74
      %s96 = sphi 0, %s98
      %s99 = sphi 0, %s96
      %s100 = sphi 0, %s99
      %s116 = sphi 0, %s100
      %s122 = sphi 0, %s124
      %s125 = sphi 0, %s122
      %s126 = sphi 0, %s125
      %s142 = sphi 0, %s126
      %s148 = sphi 0, %s150
      %s151 = sphi 0, %s148
      %s152 = sphi 0, %s151
      %s168 = sphi 0, %s152
      %s174 = sphi 0, %s176
      %s177 = sphi 0, %s174
      %s178 = sphi 0, %s177
      %s194 = sphi 0, %s178
      %s200 = sphi 0, %s202
      %s203 = sphi 0, %s200
      %s204 = sphi 0, %s203
      %s220 = sphi 0, %s204
      %s226 = sphi 0, %s228
      %s229 = sphi 0, %s226
      %s230 = sphi 0, %s229
      %s246 = sphi 0, %s230
      %s252 = sphi 0, %s254
      %s255 = sphi 0, %s252
      %s256 = sphi 0, %s255
      %s272 = sphi 0, %s256
      %s278 = sphi 0, %s280
      %s281 = sphi 0, %s278
      %s282 = sphi 0, %s281
      %s298 = sphi 0, %s282
      %s304 = sphi 0, %s306
      %s307 = sphi 0, %s304
      %s308 = sphi 0, %s307
      %s324 = sphi 0, %s308
      %s330 = sphi 0, %s332
      %s333 = sphi 0, %s330
      %s334 = sphi 0, %s333
      %s350 = sphi 0, %s334
      %s354 = sphi 0, %s354
      %s356 = sphi 0, %s354
      %s357 = sphi 0, %s356
      %s371 = sphi 0, %s357
      %s375 = sphi 0, %s375
      %s377 = sphi 0, %s375
      %s378 = sphi 0, %s377
      %s392 = sphi 0, %s378
      %s398 = sphi 0, %s400
      %s401 = sphi 0, %s398
      %s402 = sphi 0, %s401
      %s418 = sphi 0, %s402
    $region4: #{tpu_custom_call.1} parent=1 // loop_header_branch
      %25 = sbr.rel (%p23) target = $region8
    $region5: #{tpu_custom_call.1} parent=1 // loop_body
      %s27 = ssub.s32 %s22, 1
      %s28 = ssub.s32 %s22, 2
      %s35 = sadd.s32 1, %s30
      %p36 = scmp.ge.s32.totalorder %s35, 2
      %s37 = scalar_select %p36, 0, %s35
      %s38 = sadd.s32 1, %s29
      %s39 = scalar_select %p36, %s38, %s29
      %p40 = scmp.ge.s32.totalorder %s39, 1
      %s41 = scalar_select %p40, 0, %s39
      %s42 = ssub.s32 %s29, %s41
      %p43 = scmp.eq.s32.totalorder %s42, 0
      %s45 = sadd.s32 %s44, 1
      %s46 = scalar_select %p43, %s44, %s45
      %p49 = pneg %p43
      %p50 = scmp.eq.s32.totalorder %s22, 1
      %p51 = por %p49, %p50
      %p52 = scmp.ne.s32.totalorder %s44, %s47
      %p53 = scmp.eq.s32.totalorder %s22, 0
      %p54 = por %p52, %p53
      %p55 = scmp.ne.s32.totalorder %s44, %s47
      %p56 = scmp.eq.s32.totalorder %s27, 1
      %p57 = por %p55, %p56
      %p58 = scmp.ne.s32.totalorder %s47, %s48
      %p59 = scmp.eq.s32.totalorder %s27, 0
      %p60 = por %p58, %p59
      %p61 = scmp.ne.s32.totalorder %s47, %s48
      %p62 = scmp.eq.s32.totalorder %s28, 1
      %p63 = por %p61, %p62
      %p65 = scmp.ne.s32.totalorder %s48, %s64
      %p66 = scmp.eq.s32.totalorder %s28, 0
      %p67 = por %p65, %p66
      %s68 = ssub.s32 %s29, %s41
      %p69 = scmp.eq.s32.totalorder %s68, 0
      %s71 = sadd.s32 %s70, 1
      %s72 = scalar_select %p69, %s70, %s71
      %p75 = pneg %p69
      %p76 = scmp.eq.s32.totalorder %s22, 1
      %p77 = por %p75, %p76
      %p78 = scmp.ne.s32.totalorder %s70, %s73
      %p79 = scmp.eq.s32.totalorder %s22, 0
      %p80 = por %p78, %p79
      %p81 = scmp.ne.s32.totalorder %s70, %s73
      %p82 = scmp.eq.s32.totalorder %s27, 1
      %p83 = por %p81, %p82
      %p84 = scmp.ne.s32.totalorder %s73, %s74
      %p85 = scmp.eq.s32.totalorder %s27, 0
      %p86 = por %p84, %p85
      %p87 = scmp.ne.s32.totalorder %s73, %s74
      %p88 = scmp.eq.s32.totalorder %s28, 1
      %p89 = por %p87, %p88
      %p91 = scmp.ne.s32.totalorder %s74, %s90
      %p92 = scmp.eq.s32.totalorder %s28, 0
      %p93 = por %p91, %p92
      %s94 = ssub.s32 %s30, %s37
      %p95 = scmp.eq.s32.totalorder %s94, 0
      %s97 = sadd.s32 %s96, 1
      %s98 = scalar_select %p95, %s96, %s97
      %p101 = pneg %p95
      %p102 = scmp.eq.s32.totalorder %s22, 1
      %p103 = por %p101, %p102
      %p104 = scmp.ne.s32.totalorder %s96, %s99
      %p105 = scmp.eq.s32.totalorder %s22, 0
      %p106 = por %p104, %p105
      %p107 = scmp.ne.s32.totalorder %s96, %s99
      %p108 = scmp.eq.s32.totalorder %s27, 1
      %p109 = por %p107, %p108
      %p110 = scmp.ne.s32.totalorder %s99, %s100
      %p111 = scmp.eq.s32.totalorder %s27, 0
      %p112 = por %p110, %p111
      %p113 = scmp.ne.s32.totalorder %s99, %s100
      %p114 = scmp.eq.s32.totalorder %s28, 1
      %p115 = por %p113, %p114
      %p117 = scmp.ne.s32.totalorder %s100, %s116
      %p118 = scmp.eq.s32.totalorder %s28, 0
      %p119 = por %p117, %p118
      %s120 = ssub.s32 %s30, %s37
      %p121 = scmp.eq.s32.totalorder %s120, 0
      %s123 = sadd.s32 %s122, 1
      %s124 = scalar_select %p121, %s122, %s123
      %p127 = pneg %p121
      %p128 = scmp.eq.s32.totalorder %s22, 1
      %p129 = por %p127, %p128
      %p130 = scmp.ne.s32.totalorder %s122, %s125
      %p131 = scmp.eq.s32.totalorder %s22, 0
      %p132 = por %p130, %p131
      %p133 = scmp.ne.s32.totalorder %s122, %s125
      %p134 = scmp.eq.s32.totalorder %s27, 1
      %p135 = por %p133, %p134
      %p136 = scmp.ne.s32.totalorder %s125, %s126
      %p137 = scmp.eq.s32.totalorder %s27, 0
      %p138 = por %p136, %p137
      %p139 = scmp.ne.s32.totalorder %s125, %s126
      %p140 = scmp.eq.s32.totalorder %s28, 1
      %p141 = por %p139, %p140
      %p143 = scmp.ne.s32.totalorder %s126, %s142
      %p144 = scmp.eq.s32.totalorder %s28, 0
      %p145 = por %p143, %p144
      %s146 = ssub.s32 %s30, %s37
      %p147 = scmp.eq.s32.totalorder %s146, 0
      %s149 = sadd.s32 %s148, 1
      %s150 = scalar_select %p147, %s148, %s149
      %p153 = pneg %p147
      %p154 = scmp.eq.s32.totalorder %s22, 1
      %p155 = por %p153, %p154
      %p156 = scmp.ne.s32.totalorder %s148, %s151
      %p157 = scmp.eq.s32.totalorder %s22, 0
      %p158 = por %p156, %p157
      %p159 = scmp.ne.s32.totalorder %s148, %s151
      %p160 = scmp.eq.s32.totalorder %s27, 1
      %p161 = por %p159, %p160
      %p162 = scmp.ne.s32.totalorder %s151, %s152
      %p163 = scmp.eq.s32.totalorder %s27, 0
      %p164 = por %p162, %p163
      %p165 = scmp.ne.s32.totalorder %s151, %s152
      %p166 = scmp.eq.s32.totalorder %s28, 1
      %p167 = por %p165, %p166
      %p169 = scmp.ne.s32.totalorder %s152, %s168
      %p170 = scmp.eq.s32.totalorder %s28, 0
      %p171 = por %p169, %p170
      %s172 = ssub.s32 %s30, %s37
      %p173 = scmp.eq.s32.totalorder %s172, 0
      %s175 = sadd.s32 %s174, 1
      %s176 = scalar_select %p173, %s174, %s175
      %p179 = pneg %p173
      %p180 = scmp.eq.s32.totalorder %s22, 1
      %p181 = por %p179, %p180
      %p182 = scmp.ne.s32.totalorder %s174, %s177
      %p183 = scmp.eq.s32.totalorder %s22, 0
      %p184 = por %p182, %p183
      %p185 = scmp.ne.s32.totalorder %s174, %s177
      %p186 = scmp.eq.s32.totalorder %s27, 1
      %p187 = por %p185, %p186
      %p188 = scmp.ne.s32.totalorder %s177, %s178
      %p189 = scmp.eq.s32.totalorder %s27, 0
      %p190 = por %p188, %p189
      %p191 = scmp.ne.s32.totalorder %s177, %s178
      %p192 = scmp.eq.s32.totalorder %s28, 1
      %p193 = por %p191, %p192
      %p195 = scmp.ne.s32.totalorder %s178, %s194
      %p196 = scmp.eq.s32.totalorder %s28, 0
      %p197 = por %p195, %p196
      %s198 = ssub.s32 %s30, %s37
      %p199 = scmp.eq.s32.totalorder %s198, 0
      %s201 = sadd.s32 %s200, 1
      %s202 = scalar_select %p199, %s200, %s201
      %p205 = pneg %p199
      %p206 = scmp.eq.s32.totalorder %s22, 1
      %p207 = por %p205, %p206
      %p208 = scmp.ne.s32.totalorder %s200, %s203
      %p209 = scmp.eq.s32.totalorder %s22, 0
      %p210 = por %p208, %p209
      %p211 = scmp.ne.s32.totalorder %s200, %s203
      %p212 = scmp.eq.s32.totalorder %s27, 1
      %p213 = por %p211, %p212
      %p214 = scmp.ne.s32.totalorder %s203, %s204
      %p215 = scmp.eq.s32.totalorder %s27, 0
      %p216 = por %p214, %p215
      %p217 = scmp.ne.s32.totalorder %s203, %s204
      %p218 = scmp.eq.s32.totalorder %s28, 1
      %p219 = por %p217, %p218
      %p221 = scmp.ne.s32.totalorder %s204, %s220
      %p222 = scmp.eq.s32.totalorder %s28, 0
      %p223 = por %p221, %p222
      %s224 = ssub.s32 %s30, %s37
      %p225 = scmp.eq.s32.totalorder %s224, 0
      %s227 = sadd.s32 %s226, 1
      %s228 = scalar_select %p225, %s226, %s227
      %p231 = pneg %p225
      %p232 = scmp.eq.s32.totalorder %s22, 1
      %p233 = por %p231, %p232
      %p234 = scmp.ne.s32.totalorder %s226, %s229
      %p235 = scmp.eq.s32.totalorder %s22, 0
      %p236 = por %p234, %p235
      %p237 = scmp.ne.s32.totalorder %s226, %s229
      %p238 = scmp.eq.s32.totalorder %s27, 1
      %p239 = por %p237, %p238
      %p240 = scmp.ne.s32.totalorder %s229, %s230
      %p241 = scmp.eq.s32.totalorder %s27, 0
      %p242 = por %p240, %p241
      %p243 = scmp.ne.s32.totalorder %s229, %s230
      %p244 = scmp.eq.s32.totalorder %s28, 1
      %p245 = por %p243, %p244
      %p247 = scmp.ne.s32.totalorder %s230, %s246
      %p248 = scmp.eq.s32.totalorder %s28, 0
      %p249 = por %p247, %p248
      %s250 = ssub.s32 %s30, %s37
      %p251 = scmp.eq.s32.totalorder %s250, 0
      %s253 = sadd.s32 %s252, 1
      %s254 = scalar_select %p251, %s252, %s253
      %p257 = pneg %p251
      %p258 = scmp.eq.s32.totalorder %s22, 1
      %p259 = por %p257, %p258
      %p260 = scmp.ne.s32.totalorder %s252, %s255
      %p261 = scmp.eq.s32.totalorder %s22, 0
      %p262 = por %p260, %p261
      %p263 = scmp.ne.s32.totalorder %s252, %s255
      %p264 = scmp.eq.s32.totalorder %s27, 1
      %p265 = por %p263, %p264
      %p266 = scmp.ne.s32.totalorder %s255, %s256
      %p267 = scmp.eq.s32.totalorder %s27, 0
      %p268 = por %p266, %p267
      %p269 = scmp.ne.s32.totalorder %s255, %s256
      %p270 = scmp.eq.s32.totalorder %s28, 1
      %p271 = por %p269, %p270
      %p273 = scmp.ne.s32.totalorder %s256, %s272
      %p274 = scmp.eq.s32.totalorder %s28, 0
      %p275 = por %p273, %p274
      %s276 = ssub.s32 %s30, %s37
      %p277 = scmp.eq.s32.totalorder %s276, 0
      %s279 = sadd.s32 %s278, 1
      %s280 = scalar_select %p277, %s278, %s279
      %p283 = pneg %p277
      %p284 = scmp.eq.s32.totalorder %s22, 1
      %p285 = por %p283, %p284
      %p286 = scmp.ne.s32.totalorder %s278, %s281
      %p287 = scmp.eq.s32.totalorder %s22, 0
      %p288 = por %p286, %p287
      %p289 = scmp.ne.s32.totalorder %s278, %s281
      %p290 = scmp.eq.s32.totalorder %s27, 1
      %p291 = por %p289, %p290
      %p292 = scmp.ne.s32.totalorder %s281, %s282
      %p293 = scmp.eq.s32.totalorder %s27, 0
      %p294 = por %p292, %p293
      %p295 = scmp.ne.s32.totalorder %s281, %s282
      %p296 = scmp.eq.s32.totalorder %s28, 1
      %p297 = por %p295, %p296
      %p299 = scmp.ne.s32.totalorder %s282, %s298
      %p300 = scmp.eq.s32.totalorder %s28, 0
      %p301 = por %p299, %p300
      %s302 = ssub.s32 %s30, %s37
      %p303 = scmp.eq.s32.totalorder %s302, 0
      %s305 = sadd.s32 %s304, 1
      %s306 = scalar_select %p303, %s304, %s305
      %p309 = pneg %p303
      %p310 = scmp.eq.s32.totalorder %s22, 1
      %p311 = por %p309, %p310
      %p312 = scmp.ne.s32.totalorder %s304, %s307
      %p313 = scmp.eq.s32.totalorder %s22, 0
      %p314 = por %p312, %p313
      %p315 = scmp.ne.s32.totalorder %s304, %s307
      %p316 = scmp.eq.s32.totalorder %s27, 1
      %p317 = por %p315, %p316
      %p318 = scmp.ne.s32.totalorder %s307, %s308
      %p319 = scmp.eq.s32.totalorder %s27, 0
      %p320 = por %p318, %p319
      %p321 = scmp.ne.s32.totalorder %s307, %s308
      %p322 = scmp.eq.s32.totalorder %s28, 1
      %p323 = por %p321, %p322
      %p325 = scmp.ne.s32.totalorder %s308, %s324
      %p326 = scmp.eq.s32.totalorder %s28, 0
      %p327 = por %p325, %p326
      %s328 = ssub.s32 %s30, %s37
      %p329 = scmp.eq.s32.totalorder %s328, 0
      %s331 = sadd.s32 %s330, 1
      %s332 = scalar_select %p329, %s330, %s331
      %p335 = pneg %p329
      %p336 = scmp.eq.s32.totalorder %s22, 1
      %p337 = por %p335, %p336
      %p338 = scmp.ne.s32.totalorder %s330, %s333
      %p339 = scmp.eq.s32.totalorder %s22, 0
      %p340 = por %p338, %p339
      %p341 = scmp.ne.s32.totalorder %s330, %s333
      %p342 = scmp.eq.s32.totalorder %s27, 1
      %p343 = por %p341, %p342
      %p344 = scmp.ne.s32.totalorder %s333, %s334
      %p345 = scmp.eq.s32.totalorder %s27, 0
      %p346 = por %p344, %p345
      %p347 = scmp.ne.s32.totalorder %s333, %s334
      %p348 = scmp.eq.s32.totalorder %s28, 1
      %p349 = por %p347, %p348
      %p351 = scmp.ne.s32.totalorder %s334, %s350
      %p352 = scmp.eq.s32.totalorder %s28, 0
      %p353 = por %p351, %p352
      %s355 = sadd.s32 %s354, 1
      %p358 = scmp.eq.s32.totalorder %s22, 1
      %p359 = scmp.ne.s32.totalorder %s354, %s356
      %p360 = scmp.eq.s32.totalorder %s22, 0
      %p361 = por %p359, %p360
      %p362 = scmp.ne.s32.totalorder %s354, %s356
      %p363 = scmp.eq.s32.totalorder %s27, 1
      %p364 = por %p362, %p363
      %p365 = scmp.ne.s32.totalorder %s356, %s357
      %p366 = scmp.eq.s32.totalorder %s27, 0
      %p367 = por %p365, %p366
      %p368 = scmp.ne.s32.totalorder %s356, %s357
      %p369 = scmp.eq.s32.totalorder %s28, 1
      %p370 = por %p368, %p369
      %p372 = scmp.ne.s32.totalorder %s357, %s371
      %p373 = scmp.eq.s32.totalorder %s28, 0
      %p374 = por %p372, %p373
      %s376 = sadd.s32 %s375, 1
      %p379 = scmp.eq.s32.totalorder %s22, 1
      %p380 = scmp.ne.s32.totalorder %s375, %s377
      %p381 = scmp.eq.s32.totalorder %s22, 0
      %p382 = por %p380, %p381
      %p383 = scmp.ne.s32.totalorder %s375, %s377
      %p384 = scmp.eq.s32.totalorder %s27, 1
      %p385 = por %p383, %p384
      %p386 = scmp.ne.s32.totalorder %s377, %s378
      %p387 = scmp.eq.s32.totalorder %s27, 0
      %p388 = por %p386, %p387
      %p389 = scmp.ne.s32.totalorder %s377, %s378
      %p390 = scmp.eq.s32.totalorder %s28, 1
      %p391 = por %p389, %p390
      %p393 = scmp.ne.s32.totalorder %s378, %s392
      %p394 = scmp.eq.s32.totalorder %s28, 0
      %p395 = por %p393, %p394
      %s396 = ssub.s32 %s29, %s41
      %p397 = scmp.eq.s32.totalorder %s396, 0
      %s399 = sadd.s32 %s398, 1
      %s400 = scalar_select %p397, %s398, %s399
      %p403 = pneg %p397
      %p404 = scmp.eq.s32.totalorder %s22, 1
      %p405 = por %p403, %p404
      %p406 = scmp.ne.s32.totalorder %s398, %s401
      %p407 = scmp.eq.s32.totalorder %s22, 0
      %p408 = por %p406, %p407
      %p409 = scmp.ne.s32.totalorder %s398, %s401
      %p410 = scmp.eq.s32.totalorder %s27, 1
      %p411 = por %p409, %p410
      %p412 = scmp.ne.s32.totalorder %s401, %s402
      %p413 = scmp.eq.s32.totalorder %s27, 0
      %p414 = por %p412, %p413
      %p415 = scmp.ne.s32.totalorder %s401, %s402
      %p416 = scmp.eq.s32.totalorder %s28, 1
      %p417 = por %p415, %p416
      %p419 = scmp.ne.s32.totalorder %s402, %s418
      %p420 = scmp.eq.s32.totalorder %s28, 0
      %p421 = por %p419, %p420
      %p422 = scmp.le.s32.totalorder 1, %s22
      %p423 = scmp.lt.s32.totalorder %s22, 3
      %p424 = pnand %p422, %p423
      %p425 = pneg %p424
      // Predicated region
      $region9: #{tpu_custom_call.1} parent=5 // pred_check
        _
      $region10: #{tpu_custom_call.1} parent=5 // pred_check_branch
        %427 = sbr.rel (%p424) target = $region12
      $region11: #{tpu_custom_call.1} parent=5 // pred_region
        %s428 = ssub.s32 %s22, 1
        // Predicated region
        $region13: #{tpu_custom_call.1} parent=11 // pred_check
          %p429 = pneg %p60
        $region14: #{tpu_custom_call.1} parent=11 // pred_check_branch
          %431 = sbr.rel (%p429) target = $region16
        $region15: #{tpu_custom_call.1} parent=11 // pred_region
          %s432 = smul.u32 2, %s31
          %s434 = ssub.s32 256, 256
          %435 = vsyncadd [#allocation5], %s434
          %s436 = smul.addr %s432, 128
          %s437 = scalar_lea.hbm %s0, %s436
          %s438 = sshll.u32 [#allocation4], 4
          %s439 = int_to_ptr.vmem [resolvable:$true] %s438
          %444 = dma.hbm_to_vmem [thread:$0]  %s437, 256, %s439, [#allocation5], 128, 128, 8
        $region16: #{tpu_custom_call.1} parent=11 // pred_fallthru
          _
        // Predicated region
        $region17: #{tpu_custom_call.1} parent=11 // pred_check
          %p445 = pneg %p86
        $region18: #{tpu_custom_call.1} parent=11 // pred_check_branch
          %447 = sbr.rel (%p445) target = $region20
        $region19: #{tpu_custom_call.1} parent=11 // pred_region
          %s448 = smul.u32 2, %s31
          %p449 = scmp.lt.s32.totalorder %s448, 1
          %s450 = scalar_select %p449, %s448, 1
          %s451 = scalar_lea.vmem %s1, %s450
          %s452 = smul.u32 2, %s31
        $region20: #{tpu_custom_call.1} parent=11 // pred_fallthru
          _
        // Predicated region
        $region21: #{tpu_custom_call.1} parent=11 // pred_check
          %p453 = pneg %p367
        $region22: #{tpu_custom_call.1} parent=11 // pred_check_branch
          %455 = sbr.rel (%p453) target = $region24
        $region23: #{tpu_custom_call.1} parent=11 // pred_region
          _
        $region24: #{tpu_custom_call.1} parent=11 // pred_fallthru
          _
        // Predicated region
        $region25: #{tpu_custom_call.1} parent=11 // pred_check
          %p456 = pneg %p388
        $region26: #{tpu_custom_call.1} parent=11 // pred_check_branch
          %458 = sbr.rel (%p456) target = $region28
        $region27: #{tpu_custom_call.1} parent=11 // pred_region
          _
        $region28: #{tpu_custom_call.1} parent=11 // pred_fallthru
          _
      $region12: #{tpu_custom_call.1} parent=5 // pred_fallthru
        _
      %p459 = scmp.lt.s32.totalorder %s22, 2
      // Predicated region
      $region29: #{tpu_custom_call.1} parent=5 // pred_check
        %p460 = pneg %p459
      $region30: #{tpu_custom_call.1} parent=5 // pred_check_branch
        %462 = sbr.rel (%p460) target = $region32
      $region31: #{tpu_custom_call.1} parent=5 // pred_region
        // Predicated region
        $region33: #{tpu_custom_call.1} parent=31 // pred_check
          %p463 = pneg %p106
        $region34: #{tpu_custom_call.1} parent=31 // pred_check_branch
          %465 = sbr.rel (%p463) target = $region36
        $region35: #{tpu_custom_call.1} parent=31 // pred_region
          %p466 = scmp.lt.s32.totalorder %s30, 1
          %s467 = scalar_select %p466, %s30, 1
          %s468 = smul.addr %s467, 4
          %s469 = smul.addr %s468, 4
          %s470 = scalar_lea.vmem %s2, %s469
        $region36: #{tpu_custom_call.1} parent=31 // pred_fallthru
          _
        // Predicated region
        $region37: #{tpu_custom_call.1} parent=31 // pred_check
          %p471 = pneg %p132
        $region38: #{tpu_custom_call.1} parent=31 // pred_check_branch
          %473 = sbr.rel (%p471) target = $region40
        $region39: #{tpu_custom_call.1} parent=31 // pred_region
          %p474 = scmp.lt.s32.totalorder %s30, 1
          %s475 = scalar_select %p474, %s30, 1
          %s476 = smul.addr %s475, 4
          %s477 = smul.addr %s476, 4
          %s478 = scalar_lea.vmem %s3, %s477
        $region40: #{tpu_custom_call.1} parent=31 // pred_fallthru
          _
        // Predicated region
        $region41: #{tpu_custom_call.1} parent=31 // pred_check
          %p479 = pneg %p158
        $region42: #{tpu_custom_call.1} parent=31 // pred_check_branch
          %481 = sbr.rel (%p479) target = $region44
        $region43: #{tpu_custom_call.1} parent=31 // pred_region
          %p482 = scmp.lt.s32.totalorder %s30, 1
          %s483 = scalar_select %p482, %s30, 1
          %s484 = smul.addr %s483, 4
          %s485 = smul.addr %s484, 4
          %s486 = scalar_lea.vmem %s4, %s485
        $region44: #{tpu_custom_call.1} parent=31 // pred_fallthru
          _
        // Predicated region
        $region45: #{tpu_custom_call.1} parent=31 // pred_check
          %p487 = pneg %p184
        $region46: #{tpu_custom_call.1} parent=31 // pred_check_branch
          %489 = sbr.rel (%p487) target = $region48
        $region47: #{tpu_custom_call.1} parent=31 // pred_region
          %p490 = scmp.lt.s32.totalorder %s30, 1
          %s491 = scalar_select %p490, %s30, 1
          %s492 = scalar_lea.vmem %s5, %s491
        $region48: #{tpu_custom_call.1} parent=31 // pred_fallthru
          _
        // Predicated region
        $region49: #{tpu_custom_call.1} parent=31 // pred_check
          %p493 = pneg %p210
        $region50: #{tpu_custom_call.1} parent=31 // pred_check_branch
          %495 = sbr.rel (%p493) target = $region52
        $region51: #{tpu_custom_call.1} parent=31 // pred_region
          %p496 = scmp.lt.s32.totalorder %s30, 1
          %s497 = scalar_select %p496, %s30, 1
          %s498 = smul.addr %s497, 8
          %s499 = smul.addr %s498, 4
          %s500 = scalar_lea.vmem %s6, %s499
        $region52: #{tpu_custom_call.1} parent=31 // pred_fallthru
          _
        // Predicated region
        $region53: #{tpu_custom_call.1} parent=31 // pred_check
          %p501 = pneg %p236
        $region54: #{tpu_custom_call.1} parent=31 // pred_check_branch
          %503 = sbr.rel (%p501) target = $region56
        $region55: #{tpu_custom_call.1} parent=31 // pred_region
          %p504 = scmp.lt.s32.totalorder %s30, 1
          %s505 = scalar_select %p504, %s30, 1
          %s506 = scalar_lea.vmem %s7, %s505
        $region56: #{tpu_custom_call.1} parent=31 // pred_fallthru
          _
        // Predicated region
        $region57: #{tpu_custom_call.1} parent=31 // pred_check
          %p507 = pneg %p262
        $region58: #{tpu_custom_call.1} parent=31 // pred_check_branch
          %509 = sbr.rel (%p507) target = $region60
        $region59: #{tpu_custom_call.1} parent=31 // pred_region
          %p510 = scmp.lt.s32.totalorder %s30, 1
          %s511 = scalar_select %p510, %s30, 1
          %s512 = scalar_lea.vmem %s8, %s511
        $region60: #{tpu_custom_call.1} parent=31 // pred_fallthru
          _
        // Predicated region
        $region61: #{tpu_custom_call.1} parent=31 // pred_check
          %p513 = pneg %p288
        $region62: #{tpu_custom_call.1} parent=31 // pred_check_branch
          %515 = sbr.rel (%p513) target = $region64
        $region63: #{tpu_custom_call.1} parent=31 // pred_region
          %p516 = scmp.lt.s32.totalorder %s30, 1
          %s517 = scalar_select %p516, %s30, 1
          %s518 = scalar_lea.vmem %s9, %s517
        $region64: #{tpu_custom_call.1} parent=31 // pred_fallthru
          _
        // Predicated region
        $region65: #{tpu_custom_call.1} parent=31 // pred_check
          %p519 = pneg %p314
        $region66: #{tpu_custom_call.1} parent=31 // pred_check_branch
          %521 = sbr.rel (%p519) target = $region68
        $region67: #{tpu_custom_call.1} parent=31 // pred_region
          %p522 = scmp.lt.s32.totalorder %s30, 1
          %s523 = scalar_select %p522, %s30, 1
          %s524 = scalar_lea.vmem %s10, %s523
        $region68: #{tpu_custom_call.1} parent=31 // pred_fallthru
          _
        // Predicated region
        $region69: #{tpu_custom_call.1} parent=31 // pred_check
          %p525 = pneg %p340
        $region70: #{tpu_custom_call.1} parent=31 // pred_check_branch
          %527 = sbr.rel (%p525) target = $region72
        $region71: #{tpu_custom_call.1} parent=31 // pred_region
          %p528 = scmp.lt.s32.totalorder %s30, 1
          %s529 = scalar_select %p528, %s30, 1
          %s530 = scalar_lea.vmem %s11, %s529
        $region72: #{tpu_custom_call.1} parent=31 // pred_fallthru
          _
      $region32: #{tpu_custom_call.1} parent=5 // pred_fallthru
        _
      %p531 = scmp.le.s32.totalorder 1, %s22
      %p532 = scmp.lt.s32.totalorder %s22, 3
      %p533 = pnand %p531, %p532
      %p534 = pneg %p533
      // Predicated region
      $region73: #{tpu_custom_call.1} parent=5 // pred_check
        _
      $region74: #{tpu_custom_call.1} parent=5 // pred_check_branch
        %536 = sbr.rel (%p533) target = $region76
      $region75: #{tpu_custom_call.1} parent=5 // pred_region
        %s537 = ssub.s32 %s22, 1
        // Predicated region
        $region77: #{tpu_custom_call.1} parent=75 // pred_check
          %p538 = pneg %p60
        $region78: #{tpu_custom_call.1} parent=75 // pred_check_branch
          %540 = sbr.rel (%p538) target = $region80
        $region79: #{tpu_custom_call.1} parent=75 // pred_region
          %541 = dma.done [#allocation5], 256
        $region80: #{tpu_custom_call.1} parent=75 // pred_fallthru
          _
        %p542 = pneg %p60
        %p543 = pneg %p57
        %s544 = smul.u32 2, %s31
        %p545 = scmp.lt.s32.totalorder %s544, 1
        %s546 = scalar_select %p545, %s544, 1
        %s547 = scalar_lea.vmem %s1, %s546
        %p548 = pneg %p86
        %p549 = pneg %p83
        %p550 = scmp.lt.s32.totalorder %s32, 1
        %s551 = scalar_select %p550, %s32, 1
        %s552 = smul.addr %s551, 4
        %s553 = smul.addr %s552, 4
        %s554 = scalar_lea.vmem %s2, %s553
        %p555 = pneg %p112
        %p556 = pneg %p109
        %p557 = scmp.lt.s32.totalorder %s32, 1
        %s558 = scalar_select %p557, %s32, 1
        %s559 = smul.addr %s558, 4
        %s560 = smul.addr %s559, 4
        %s561 = scalar_lea.vmem %s3, %s560
        %p562 = pneg %p138
        %p563 = pneg %p135
        %p564 = scmp.lt.s32.totalorder %s32, 1
        %s565 = scalar_select %p564, %s32, 1
        %s566 = smul.addr %s565, 4
        %s567 = smul.addr %s566, 4
        %s568 = scalar_lea.vmem %s4, %s567
        %p569 = pneg %p164
        %p570 = pneg %p161
        %p571 = scmp.lt.s32.totalorder %s32, 1
        %s572 = scalar_select %p571, %s32, 1
        %s573 = scalar_lea.vmem %s5, %s572
        %p574 = pneg %p190
        %p575 = pneg %p187
        %p576 = scmp.lt.s32.totalorder %s32, 1
        %s577 = scalar_select %p576, %s32, 1
        %s578 = smul.addr %s577, 8
        %s579 = smul.addr %s578, 4
        %s580 = scalar_lea.vmem %s6, %s579
        %p581 = pneg %p216
        %p582 = pneg %p213
        %p583 = scmp.lt.s32.totalorder %s32, 1
        %s584 = scalar_select %p583, %s32, 1
        %s585 = scalar_lea.vmem %s7, %s584
        %p586 = pneg %p242
        %p587 = pneg %p239
        %p588 = scmp.lt.s32.totalorder %s32, 1
        %s589 = scalar_select %p588, %s32, 1
        %s590 = scalar_lea.vmem %s8, %s589
        %p591 = pneg %p268
        %p592 = pneg %p265
        %p593 = scmp.lt.s32.totalorder %s32, 1
        %s594 = scalar_select %p593, %s32, 1
        %s595 = scalar_lea.vmem %s9, %s594
        %p596 = pneg %p294
        %p597 = pneg %p291
        %p598 = scmp.lt.s32.totalorder %s32, 1
        %s599 = scalar_select %p598, %s32, 1
        %s600 = scalar_lea.vmem %s10, %s599
        %p601 = pneg %p320
        %p602 = pneg %p317
        %p603 = scmp.lt.s32.totalorder %s32, 1
        %s604 = scalar_select %p603, %s32, 1
        %s605 = scalar_lea.vmem %s11, %s604
        %p606 = pneg %p346
        %p607 = pneg %p343
        %p608 = pneg %p367
        %p609 = pneg %p364
        %p610 = pneg %p388
        %p611 = pneg %p385
        %p612 = pneg %p414
        %p613 = pneg %p411
        %s614 = smul.u32 2, %s31
        %s615 = smul.u32 2, %s31
        %p616 = scmp.lt.s32.totalorder %s615, 1
        %s617 = scalar_select %p616, %s615, 1
        %s618 = scalar_lea.vmem %s1, %s617
        %s619 = smul.u32 2, %s31
        %p620 = scmp.lt.s32.totalorder %s32, 1
        %s621 = scalar_select %p620, %s32, 1
        %s622 = smul.addr %s621, 4
        %s623 = smul.addr %s622, 4
        %s624 = scalar_lea.vmem %s2, %s623
        %p625 = scmp.lt.s32.totalorder %s32, 1
        %s626 = scalar_select %p625, %s32, 1
        %s627 = smul.addr %s626, 4
        %s628 = smul.addr %s627, 4
        %s629 = scalar_lea.vmem %s3, %s628
        %p630 = scmp.lt.s32.totalorder %s32, 1
        %s631 = scalar_select %p630, %s32, 1
        %s632 = smul.addr %s631, 4
        %s633 = smul.addr %s632, 4
        %s634 = scalar_lea.vmem %s4, %s633
        %p635 = scmp.lt.s32.totalorder %s32, 1
        %s636 = scalar_select %p635, %s32, 1
        %s637 = scalar_lea.vmem %s5, %s636
        %p638 = scmp.lt.s32.totalorder %s32, 1
        %s639 = scalar_select %p638, %s32, 1
        %s640 = smul.addr %s639, 8
        %s641 = smul.addr %s640, 4
        %s642 = scalar_lea.vmem %s6, %s641
        %p643 = scmp.lt.s32.totalorder %s32, 1
        %s644 = scalar_select %p643, %s32, 1
        %s645 = scalar_lea.vmem %s7, %s644
        %p646 = scmp.lt.s32.totalorder %s32, 1
        %s647 = scalar_select %p646, %s32, 1
        %s648 = scalar_lea.vmem %s8, %s647
        %p649 = scmp.lt.s32.totalorder %s32, 1
        %s650 = scalar_select %p649, %s32, 1
        %s651 = scalar_lea.vmem %s9, %s650
        %p652 = scmp.lt.s32.totalorder %s32, 1
        %s653 = scalar_select %p652, %s32, 1
        %s654 = scalar_lea.vmem %s10, %s653
        %p655 = scmp.lt.s32.totalorder %s32, 1
        %s656 = scalar_select %p655, %s32, 1
        %s657 = scalar_lea.vmem %s11, %s656
        %s658 = smul.u32 2, %s31
        %p660 = scmp.eq.s32.totalorder %s32, 0
        // Predicated region
        $region81: #{tpu_custom_call.1} parent=75 // pred_check
          %p661 = pneg %p660
        $region82: #{tpu_custom_call.1} parent=75 // pred_check_branch
          %663 = sbr.rel (%p661) target = $region84
        $region83: #{tpu_custom_call.1} parent=75 // pred_region
          %v664 = vld [vmem:[#allocation4] sm:$0xff]
          %vm665 = vcmask 261120
          %666 = vst.msk [vmem:[#allocation2] sm:$0xff] %vm665, %v664
          %s667 = scalar_lea.vmem [#allocation4], 8
          %v668 = vld [vmem:[%s667] sm:$0xff]
          %669 = vst.msk [vmem:[#allocation2 + $0x8] sm:$0xff] %vm665, %v668
        $region84: #{tpu_custom_call.1} parent=75 // pred_fallthru
          _
        %v670 = vld [vmem:[#allocation2] sm:$0xff]
        %v671 = vld [vmem:[#allocation2 + $0x8] sm:$0xff]
        %v672 = vld [vmem:[%s648] sm:$0x1]
        %v673 = vld [vmem:[%s651] sm:$0x1]
        %vm674 = vcmask 261120
        %v675 = vsel %vm674, %v670, 0.0
        %676 = vadd.xlane.f32.xlu0 %v675
        %v677 = vpop.xlane.xlu0 %676
        %v678 = vsel %vm674, %v671, 0.0
        %679 = vadd.xlane.f32.xlu0 %v678
        %v680 = vpop.xlane.xlu0 %679
        %v681 = vrcp.pop 32.0
        %v682 = vmul.f32 %v677, %v681
        %v683 = vmul.f32 %v680, %v681
        %v684 = vsub.f32 %v670, %v682
        %v685 = vsub.f32 %v671, %v683
        %v686 = vmul.f32 %v684, %v684
        %v687 = vmul.f32 %v685, %v685
        %v688 = vsel %vm674, %v686, 0.0
        %689 = vadd.xlane.f32.xlu0 %v688
        %v690 = vpop.xlane.xlu0 %689
        %v691 = vsel %vm674, %v687, 0.0
        %692 = vadd.xlane.f32.xlu0 %v691
        %v693 = vpop.xlane.xlu0 %692
        %v694 = vrcp.pop 31.0
        %v695 = vmul.f32 %v690, %v694
        %v696 = vmul.f32 %v693, %v694
        %v697 = vrsqrt.pop %v695
        %v698 = vmul.f32 %v695, %v697
        %vm699 = vcmp.eq.f32.partialorder %v695, inf
        %v700 = vsel %vm699, %v695, %v698
        %vm701 = vcmp.eq.f32.partialorder %v695, 0.0
        %v702 = vand.u32 %v695, 2147483648
        %v703 = vsel %vm701, %v702, %v700
        %v704 = vrsqrt.pop %v696
        %v705 = vmul.f32 %v696, %v704
        %vm706 = vcmp.eq.f32.partialorder %v696, inf
        %v707 = vsel %vm706, %v696, %v705
        %vm708 = vcmp.eq.f32.partialorder %v696, 0.0
        %v709 = vand.u32 %v696, 2147483648
        %v710 = vsel %vm708, %v709, %v707
        %v712 = vlaneseq
        %v713 = vshrl.u32 %v712, 7
        %v714 = vsub.s32 0, %v713
        %v715 = vrot.slane %v672, %v714
        %v717 = vmul.f32 %v715, %v684
        %v718 = vmul.f32 %v715, %v685
        %v719 = vadd.f32 %v703, 1e-06
        %v720 = vadd.f32 %v710, 1e-06
        %v721 = vrcp.pop %v719
        %v722 = vmul.f32 %v717, %v721
        %v723 = vrcp.pop %v720
        %v724 = vmul.f32 %v718, %v723
        %v726 = vlaneseq
        %v727 = vshrl.u32 %v726, 7
        %v728 = vsub.s32 0, %v727
        %v729 = vrot.slane %v673, %v728
        %v731 = vadd.f32 %v722, %v729
        %v732 = vadd.f32 %v724, %v729
        %v733 = vpack.c.bf16 %v732, %v731
        %v734 = vld [vmem:[%s624] sm:$0xf]
        %v735 = vld [vmem:[%s624 + $0x4] sm:$0xf]
        %v736 = vld [vmem:[%s624 + $0x8] sm:$0xf]
        %v737 = vld [vmem:[%s624 + $0xc] sm:$0xf]
        %v742 = vunpack.c.l.b16 %v734
        %v743 = vunpack.c.l.b16 %v735
        %v744 = vunpack.c.l.b16 %v736
        %v745 = vunpack.c.l.b16 %v737
        %v746 = vpack.c.b16 %v743, %v742
        %v747 = vpack.c.b16 %v745, %v744
        %v751 = vsel %vm674, %v733, 0
        %753 = vmatprep.subr.bf16.mxu0 0
        %754 = vmatpush1.bf16.msra.mxu0 %v746
        %755 = vmatprep.subr.bf16.mxu0 0
        %756 = vmatpush1.bf16.msra.mxu0 %v747
        %757 = vmatprep.subr.bf16.mxu0 0
        %758 = vmatpush1.bf16.msra.mxu0 0
        %759 = vmatprep.subr.bf16.mxu0 0
        %760 = vmatpush1.bf16.msra.mxu0 0
        %761 = vmatprep.subr.bf16.mxu0 0
        %762 = vmatpush1.bf16.msra.mxu0 0
        %763 = vmatprep.subr.bf16.mxu0 0
        %764 = vmatpush1.bf16.msra.mxu0 0
        %765 = vmatprep.subr.bf16.mxu0 0
        %766 = vmatpush1.bf16.msra.mxu0 0
        %767 = vmatprep.subr.bf16.mxu0 0
        %768 = vmatpush1.bf16.msra.mxu0 0
        %769 = vmatprep.subr.bf16.mxu0 0
        %770 = vmatpush1.bf16.msra.mxu0 0
        %771 = vmatprep.subr.bf16.mxu0 0
        %772 = vmatpush1.bf16.msra.mxu0 0
        %773 = vmatprep.subr.bf16.mxu0 0
        %774 = vmatpush1.bf16.msra.mxu0 0
        %775 = vmatprep.subr.bf16.mxu0 0
        %776 = vmatpush1.bf16.msra.mxu0 0
        %777 = vmatprep.subr.bf16.mxu0 0
        %778 = vmatpush1.bf16.msra.mxu0 0
        %779 = vmatprep.subr.bf16.mxu0 0
        %780 = vmatpush1.bf16.msra.mxu0 0
        %781 = vmatprep.subr.bf16.mxu0 0
        %782 = vmatpush1.bf16.msra.mxu0 0
        %783 = vmatprep.subr.bf16.mxu0 0
        %784 = vmatpush1.bf16.msra.mxu0 0
        %785 = vmatprep.mubr.bf16.mxu0 0
        %786 = vmatmul.mubr.bf16.gmra.mrb[0].mxu0 %v751
        %v787 = vpop.f32.mrb[0].mxu0
        %v788 = vadd.f32 0.0, %v787
        %v789 = vpop.f32.mrb[0].mxu0
        %v790 = vpop.f32.mrb[0].mxu0
        %v791 = vadd.f32 0.0, %v790
        %v792 = vpop.f32.mrb[0].mxu0
        %793 = vdwg.mxu0
        %v794 = vpack.c.bf16 %v791, %v788
        %v795 = vld [vmem:[%s618] sm:$0x1]
        %v797 = vlaneseq
        %v798 = vshrl.u32 %v797, 7
        %v799 = vsub.s32 0, %v798
        %v800 = vrot.slane %v795, %v799
        %803 = vrot.lane.b32.xlu0 %v794, 96
        %v804 = vpop.permute.xlu0 %803
        %vm805 = vcmask 64512
        %v807 = vsel %vm805, %v794, 0
        %v810 = vsel %vm805, %v804, 0
        %812 = vmatprep.subr.bf16.mxu0 0
        %813 = vmatpush1.bf16.xpose.msra.mxu0 %v810
        %814 = vmatprep.subr.bf16.mxu0 0
        %815 = vmatpush1.bf16.xpose.msra.mxu0 0
        %816 = vmatprep.subr.bf16.mxu0 0
        %817 = vmatpush1.bf16.xpose.msra.mxu0 0
        %818 = vmatprep.subr.bf16.mxu0 0
        %819 = vmatpush1.bf16.xpose.msra.mxu0 0
        %820 = vmatprep.subr.bf16.mxu0 0
        %821 = vmatpush1.bf16.xpose.msra.mxu0 0
        %822 = vmatprep.subr.bf16.mxu0 0
        %823 = vmatpush1.bf16.xpose.msra.mxu0 0
        %824 = vmatprep.subr.bf16.mxu0 0
        %825 = vmatpush1.bf16.xpose.msra.mxu0 0
        %826 = vmatprep.subr.bf16.mxu0 0
        %827 = vmatpush1.bf16.xpose.msra.mxu0 0
        %828 = vmatprep.subr.bf16.mxu0 0
        %829 = vmatpush1.bf16.xpose.msra.mxu0 0
        %830 = vmatprep.subr.bf16.mxu0 0
        %831 = vmatpush1.bf16.xpose.msra.mxu0 0
        %832 = vmatprep.subr.bf16.mxu0 0
        %833 = vmatpush1.bf16.xpose.msra.mxu0 0
        %834 = vmatprep.subr.bf16.mxu0 0
        %835 = vmatpush1.bf16.xpose.msra.mxu0 0
        %836 = vmatprep.subr.bf16.mxu0 0
        %837 = vmatpush1.bf16.xpose.msra.mxu0 0
        %838 = vmatprep.subr.bf16.mxu0 0
        %839 = vmatpush1.bf16.xpose.msra.mxu0 0
        %840 = vmatprep.subr.bf16.mxu0 0
        %841 = vmatpush1.bf16.xpose.msra.mxu0 0
        %842 = vmatprep.subr.bf16.mxu0 0
        %843 = vmatpush1.bf16.xpose.msra.mxu0 0
        %844 = vmatprep.mubr.bf16.mxu0 0
        %845 = vmatmul.mubr.bf16.gmra.mrb[0].mxu0 %v807
        %v846 = vpop.f32.mrb[0].mxu0
        %v847 = vadd.f32 %v800, %v846
        %v848 = vpop.f32.mrb[0].mxu0
        %v849 = vpop.f32.mrb[0].mxu0
        %v850 = vpop.f32.mrb[0].mxu0
        %851 = vdwg.mxu0
        %v852 = vsel %vm805, %v847, -inf
        %853 = vmax.xlane.f32.xlu0 %v852
        %v854 = vpop.xlane.xlu0 %853
        %v855 = vsub.f32 %v847, %v854
        %v856 = vmul.f32 %v855, 1.442695
        %v857 = vpow.pop %v856
        %v858 = vsel %vm805, %v857, 0.0
        %859 = vadd.xlane.f32.xlu0 %v858
        %v860 = vpop.xlane.xlu0 %859
        %v861 = vrcp.pop %v860
        %v862 = vmul.f32 %v857, %v861
        %v863 = vpack.c.bf16 %v862, %v862
        %864 = vrot.lane.b32.xlu0 %v794, 64
        %v865 = vpop.permute.xlu0 %864
        %v867 = vsel %vm805, %v863, 0
        %vm869 = vcmask 1043456
        %v871 = vsel %vm869, %v865, 0
        %873 = vmatprep.subr.bf16.mxu0 0
        %874 = vmatpush1.bf16.msra.mxu0 %v871
        %875 = vmatprep.subr.bf16.mxu0 0
        %876 = vmatpush1.bf16.msra.mxu0 0
        %877 = vmatprep.subr.bf16.mxu0 0
        %878 = vmatpush1.bf16.msra.mxu0 0
        %879 = vmatprep.subr.bf16.mxu0 0
        %880 = vmatpush1.bf16.msra.mxu0 0
        %881 = vmatprep.subr.bf16.mxu0 0
        %882 = vmatpush1.bf16.msra.mxu0 0
        %883 = vmatprep.subr.bf16.mxu0 0
        %884 = vmatpush1.bf16.msra.mxu0 0
        %885 = vmatprep.subr.bf16.mxu0 0
        %886 = vmatpush1.bf16.msra.mxu0 0
        %887 = vmatprep.subr.bf16.mxu0 0
        %888 = vmatpush1.bf16.msra.mxu0 0
        %889 = vmatprep.subr.bf16.mxu0 0
        %890 = vmatpush1.bf16.msra.mxu0 0
        %891 = vmatprep.subr.bf16.mxu0 0
        %892 = vmatpush1.bf16.msra.mxu0 0
        %893 = vmatprep.subr.bf16.mxu0 0
        %894 = vmatpush1.bf16.msra.mxu0 0
        %895 = vmatprep.subr.bf16.mxu0 0
        %896 = vmatpush1.bf16.msra.mxu0 0
        %897 = vmatprep.subr.bf16.mxu0 0
        %898 = vmatpush1.bf16.msra.mxu0 0
        %899 = vmatprep.subr.bf16.mxu0 0
        %900 = vmatpush1.bf16.msra.mxu0 0
        %901 = vmatprep.subr.bf16.mxu0 0
        %902 = vmatpush1.bf16.msra.mxu0 0
        %903 = vmatprep.subr.bf16.mxu0 0
        %904 = vmatpush1.bf16.msra.mxu0 0
        %905 = vmatprep.mubr.bf16.mxu0 0
        %906 = vmatmul.mubr.bf16.gmra.mrb[0].mxu0 %v867
        %v907 = vpop.f32.mrb[0].mxu0
        %v908 = vadd.f32 0.0, %v907
        %v909 = vpop.f32.mrb[0].mxu0
        %v910 = vpop.f32.mrb[0].mxu0
        %v911 = vpop.f32.mrb[0].mxu0
        %912 = vdwg.mxu0
        %913 = vst.msk [vmem:[#allocation3] sm:$0xff] %vm805, %v908
        %914 = vrot.lane.b32.xlu0 %v794, 120
        %v915 = vpop.permute.xlu0 %914
        %916 = vrot.lane.b32.xlu0 %v794, 88
        %v917 = vpop.permute.xlu0 %916
        %v919 = vsel %vm805, %v915, 0
        %v922 = vsel %vm805, %v917, 0
        %924 = vmatprep.subr.bf16.mxu0 0
        %925 = vmatpush1.bf16.xpose.msra.mxu0 %v922
        %926 = vmatprep.subr.bf16.mxu0 0
        %927 = vmatpush1.bf16.xpose.msra.mxu0 0
        %928 = vmatprep.subr.bf16.mxu0 0
        %929 = vmatpush1.bf16.xpose.msra.mxu0 0
        %930 = vmatprep.subr.bf16.mxu0 0
        %931 = vmatpush1.bf16.xpose.msra.mxu0 0
        %932 = vmatprep.subr.bf16.mxu0 0
        %933 = vmatpush1.bf16.xpose.msra.mxu0 0
        %934 = vmatprep.subr.bf16.mxu0 0
        %935 = vmatpush1.bf16.xpose.msra.mxu0 0
        %936 = vmatprep.subr.bf16.mxu0 0
        %937 = vmatpush1.bf16.xpose.msra.mxu0 0
        %938 = vmatprep.subr.bf16.mxu0 0
        %939 = vmatpush1.bf16.xpose.msra.mxu0 0
        %940 = vmatprep.subr.bf16.mxu0 0
        %941 = vmatpush1.bf16.xpose.msra.mxu0 0
        %942 = vmatprep.subr.bf16.mxu0 0
        %943 = vmatpush1.bf16.xpose.msra.mxu0 0
        %944 = vmatprep.subr.bf16.mxu0 0
        %945 = vmatpush1.bf16.xpose.msra.mxu0 0
        %946 = vmatprep.subr.bf16.mxu0 0
        %947 = vmatpush1.bf16.xpose.msra.mxu0 0
        %948 = vmatprep.subr.bf16.mxu0 0
        %949 = vmatpush1.bf16.xpose.msra.mxu0 0
        %950 = vmatprep.subr.bf16.mxu0 0
        %951 = vmatpush1.bf16.xpose.msra.mxu0 0
        %952 = vmatprep.subr.bf16.mxu0 0
        %953 = vmatpush1.bf16.xpose.msra.mxu0 0
        %954 = vmatprep.subr.bf16.mxu0 0
        %955 = vmatpush1.bf16.xpose.msra.mxu0 0
        %956 = vmatprep.mubr.bf16.mxu0 0
        %957 = vmatmul.mubr.bf16.gmra.mrb[0].mxu0 %v919
        %v958 = vpop.f32.mrb[0].mxu0
        %v959 = vadd.f32 %v800, %v958
        %v960 = vpop.f32.mrb[0].mxu0
        %v961 = vpop.f32.mrb[0].mxu0
        %v962 = vpop.f32.mrb[0].mxu0
        %963 = vdwg.mxu0
        %v964 = vsel %vm805, %v959, -inf
        %965 = vmax.xlane.f32.xlu0 %v964
        %v966 = vpop.xlane.xlu0 %965
        %v967 = vsub.f32 %v959, %v966
        %v968 = vmul.f32 %v967, 1.442695
        %v969 = vpow.pop %v968
        %v970 = vsel %vm805, %v969, 0.0
        %971 = vadd.xlane.f32.xlu0 %v970
        %v972 = vpop.xlane.xlu0 %971
        %v973 = vrcp.pop %v972
        %v974 = vmul.f32 %v969, %v973
        %v975 = vpack.c.bf16 %v974, %v974
        %976 = vrot.lane.b32.xlu0 %v794, 56
        %v977 = vpop.permute.xlu0 %976
        %v979 = vsel %vm805, %v975, 0
        %v982 = vsel %vm869, %v977, 0
        %984 = vmatprep.subr.bf16.mxu0 0
        %985 = vmatpush1.bf16.msra.mxu0 %v982
        %986 = vmatprep.subr.bf16.mxu0 0
        %987 = vmatpush1.bf16.msra.mxu0 0
        %988 = vmatprep.subr.bf16.mxu0 0
        %989 = vmatpush1.bf16.msra.mxu0 0
        %990 = vmatprep.subr.bf16.mxu0 0
        %991 = vmatpush1.bf16.msra.mxu0 0
        %992 = vmatprep.subr.bf16.mxu0 0
        %993 = vmatpush1.bf16.msra.mxu0 0
        %994 = vmatprep.subr.bf16.mxu0 0
        %995 = vmatpush1.bf16.msra.mxu0 0
        %996 = vmatprep.subr.bf16.mxu0 0
        %997 = vmatpush1.bf16.msra.mxu0 0
        %998 = vmatprep.subr.bf16.mxu0 0
        %999 = vmatpush1.bf16.msra.mxu0 0
        %1000 = vmatprep.subr.bf16.mxu0 0
        %1001 = vmatpush1.bf16.msra.mxu0 0
        %1002 = vmatprep.subr.bf16.mxu0 0
        %1003 = vmatpush1.bf16.msra.mxu0 0
        %1004 = vmatprep.subr.bf16.mxu0 0
        %1005 = vmatpush1.bf16.msra.mxu0 0
        %1006 = vmatprep.subr.bf16.mxu0 0
        %1007 = vmatpush1.bf16.msra.mxu0 0
        %1008 = vmatprep.subr.bf16.mxu0 0
        %1009 = vmatpush1.bf16.msra.mxu0 0
        %1010 = vmatprep.subr.bf16.mxu0 0
        %1011 = vmatpush1.bf16.msra.mxu0 0
        %1012 = vmatprep.subr.bf16.mxu0 0
        %1013 = vmatpush1.bf16.msra.mxu0 0
        %1014 = vmatprep.subr.bf16.mxu0 0
        %1015 = vmatpush1.bf16.msra.mxu0 0
        %1016 = vmatprep.mubr.bf16.mxu0 0
        %1017 = vmatmul.mubr.bf16.gmra.mrb[0].mxu0 %v979
        %v1018 = vpop.f32.mrb[0].mxu0
        %v1019 = vadd.f32 0.0, %v1018
        %v1020 = vpop.f32.mrb[0].mxu0
        %v1021 = vpop.f32.mrb[0].mxu0
        %v1022 = vpop.f32.mrb[0].mxu0
        %1023 = vdwg.mxu0
        %1025 = vrot.lane.b32.xlu0 %v1019, 8
        %v1026 = vpop.permute.xlu0 %1025
        %vm1028 = vcmask 130112
        %1029 = vst.msk [vmem:[#allocation3] sm:$0xff] %vm1028, %v1026
        %1030 = vrot.lane.b32.xlu0 %v794, 112
        %v1031 = vpop.permute.xlu0 %1030
        %1032 = vrot.lane.b32.xlu0 %v794, 80
        %v1033 = vpop.permute.xlu0 %1032
        %v1035 = vsel %vm805, %v1031, 0
        %v1038 = vsel %vm805, %v1033, 0
        %1040 = vmatprep.subr.bf16.mxu0 0
        %1041 = vmatpush1.bf16.xpose.msra.mxu0 %v1038
        %1042 = vmatprep.subr.bf16.mxu0 0
        %1043 = vmatpush1.bf16.xpose.msra.mxu0 0
        %1044 = vmatprep.subr.bf16.mxu0 0
        %1045 = vmatpush1.bf16.xpose.msra.mxu0 0
        %1046 = vmatprep.subr.bf16.mxu0 0
        %1047 = vmatpush1.bf16.xpose.msra.mxu0 0
        %1048 = vmatprep.subr.bf16.mxu0 0
        %1049 = vmatpush1.bf16.xpose.msra.mxu0 0
        %1050 = vmatprep.subr.bf16.mxu0 0
        %1051 = vmatpush1.bf16.xpose.msra.mxu0 0
        %1052 = vmatprep.subr.bf16.mxu0 0
        %1053 = vmatpush1.bf16.xpose.msra.mxu0 0
        %1054 = vmatprep.subr.bf16.mxu0 0
        %1055 = vmatpush1.bf16.xpose.msra.mxu0 0
        %1056 = vmatprep.subr.bf16.mxu0 0
        %1057 = vmatpush1.bf16.xpose.msra.mxu0 0
        %1058 = vmatprep.subr.bf16.mxu0 0
        %1059 = vmatpush1.bf16.xpose.msra.mxu0 0
        %1060 = vmatprep.subr.bf16.mxu0 0
        %1061 = vmatpush1.bf16.xpose.msra.mxu0 0
        %1062 = vmatprep.subr.bf16.mxu0 0
        %1063 = vmatpush1.bf16.xpose.msra.mxu0 0
        %1064 = vmatprep.subr.bf16.mxu0 0
        %1065 = vmatpush1.bf16.xpose.msra.mxu0 0
        %1066 = vmatprep.subr.bf16.mxu0 0
        %1067 = vmatpush1.bf16.xpose.msra.mxu0 0
        %1068 = vmatprep.subr.bf16.mxu0 0
        %1069 = vmatpush1.bf16.xpose.msra.mxu0 0
        %1070 = vmatprep.subr.bf16.mxu0 0
        %1071 = vmatpush1.bf16.xpose.msra.mxu0 0
        %1072 = vmatprep.mubr.bf16.mxu0 0
        %1073 = vmatmul.mubr.bf16.gmra.mrb[0].mxu0 %v1035
        %v1074 = vpop.f32.mrb[0].mxu0
        %v1075 = vadd.f32 %v800, %v1074
        %v1076 = vpop.f32.mrb[0].mxu0
        %v1077 = vpop.f32.mrb[0].mxu0
        %v1078 = vpop.f32.mrb[0].mxu0
        %1079 = vdwg.mxu0
        %v1080 = vsel %vm805, %v1075, -inf
        %1081 = vmax.xlane.f32.xlu0 %v1080
        %v1082 = vpop.xlane.xlu0 %1081
        %v1083 = vsub.f32 %v1075, %v1082
        %v1084 = vmul.f32 %v1083, 1.442695
        %v1085 = vpow.pop %v1084
        %v1086 = vsel %vm805, %v1085, 0.0
        %1087 = vadd.xlane.f32.xlu0 %v1086
        %v1088 = vpop.xlane.xlu0 %1087
        %v1089 = vrcp.pop %v1088
        %v1090 = vmul.f32 %v1085, %v1089
        %v1091 = vpack.c.bf16 %v1090, %v1090
        %1092 = vrot.lane.b32.xlu0 %v794, 48
        %v1093 = vpop.permute.xlu0 %1092
        %v1095 = vsel %vm805, %v1091, 0
        %v1098 = vsel %vm869, %v1093, 0
        %1100 = vmatprep.subr.bf16.mxu0 0
        %1101 = vmatpush1.bf16.msra.mxu0 %v1098
        %1102 = vmatprep.subr.bf16.mxu0 0
        %1103 = vmatpush1.bf16.msra.mxu0 0
        %1104 = vmatprep.subr.bf16.mxu0 0
        %1105 = vmatpush1.bf16.msra.mxu0 0
        %1106 = vmatprep.subr.bf16.mxu0 0
        %1107 = vmatpush1.bf16.msra.mxu0 0
        %1108 = vmatprep.subr.bf16.mxu0 0
        %1109 = vmatpush1.bf16.msra.mxu0 0
        %1110 = vmatprep.subr.bf16.mxu0 0
        %1111 = vmatpush1.bf16.msra.mxu0 0
        %1112 = vmatprep.subr.bf16.mxu0 0
        %1113 = vmatpush1.bf16.msra.mxu0 0
        %1114 = vmatprep.subr.bf16.mxu0 0
        %1115 = vmatpush1.bf16.msra.mxu0 0
        %1116 = vmatprep.subr.bf16.mxu0 0
        %1117 = vmatpush1.bf16.msra.mxu0 0
        %1118 = vmatprep.subr.bf16.mxu0 0
        %1119 = vmatpush1.bf16.msra.mxu0 0
        %1120 = vmatprep.subr.bf16.mxu0 0
        %1121 = vmatpush1.bf16.msra.mxu0 0
        %1122 = vmatprep.subr.bf16.mxu0 0
        %1123 = vmatpush1.bf16.msra.mxu0 0
        %1124 = vmatprep.subr.bf16.mxu0 0
        %1125 = vmatpush1.bf16.msra.mxu0 0
        %1126 = vmatprep.subr.bf16.mxu0 0
        %1127 = vmatpush1.bf16.msra.mxu0 0
        %1128 = vmatprep.subr.bf16.mxu0 0
        %1129 = vmatpush1.bf16.msra.mxu0 0
        %1130 = vmatprep.subr.bf16.mxu0 0
        %1131 = vmatpush1.bf16.msra.mxu0 0
        %1132 = vmatprep.mubr.bf16.mxu0 0
        %1133 = vmatmul.mubr.bf16.gmra.mrb[0].mxu0 %v1095
        %v1134 = vpop.f32.mrb[0].mxu0
        %v1135 = vadd.f32 0.0, %v1134
        %v1136 = vpop.f32.mrb[0].mxu0
        %v1137 = vpop.f32.mrb[0].mxu0
        %v1138 = vpop.f32.mrb[0].mxu0
        %1139 = vdwg.mxu0
        %1141 = vrot.lane.b32.xlu0 %v1135, 16
        %v1142 = vpop.permute.xlu0 %1141
        %vm1144 = vcmask 195712
        %1145 = vst.msk [vmem:[#allocation3] sm:$0xff] %vm1144, %v1142
        %1146 = vrot.lane.b32.xlu0 %v794, 104
        %v1147 = vpop.permute.xlu0 %1146
        %1148 = vrot.lane.b32.xlu0 %v794, 72
        %v1149 = vpop.permute.xlu0 %1148
        %v1151 = vsel %vm805, %v1147, 0
        %v1154 = vsel %vm805, %v1149, 0
        %1156 = vmatprep.subr.bf16.mxu0 0
        %1157 = vmatpush1.bf16.xpose.msra.mxu0 %v1154
        %1158 = vmatprep.subr.bf16.mxu0 0
        %1159 = vmatpush1.bf16.xpose.msra.mxu0 0
        %1160 = vmatprep.subr.bf16.mxu0 0
        %1161 = vmatpush1.bf16.xpose.msra.mxu0 0
        %1162 = vmatprep.subr.bf16.mxu0 0
        %1163 = vmatpush1.bf16.xpose.msra.mxu0 0
        %1164 = vmatprep.subr.bf16.mxu0 0
        %1165 = vmatpush1.bf16.xpose.msra.mxu0 0
        %1166 = vmatprep.subr.bf16.mxu0 0
        %1167 = vmatpush1.bf16.xpose.msra.mxu0 0
        %1168 = vmatprep.subr.bf16.mxu0 0
        %1169 = vmatpush1.bf16.xpose.msra.mxu0 0
        %1170 = vmatprep.subr.bf16.mxu0 0
        %1171 = vmatpush1.bf16.xpose.msra.mxu0 0
        %1172 = vmatprep.subr.bf16.mxu0 0
        %1173 = vmatpush1.bf16.xpose.msra.mxu0 0
        %1174 = vmatprep.subr.bf16.mxu0 0
        %1175 = vmatpush1.bf16.xpose.msra.mxu0 0
        %1176 = vmatprep.subr.bf16.mxu0 0
        %1177 = vmatpush1.bf16.xpose.msra.mxu0 0
        %1178 = vmatprep.subr.bf16.mxu0 0
        %1179 = vmatpush1.bf16.xpose.msra.mxu0 0
        %1180 = vmatprep.subr.bf16.mxu0 0
        %1181 = vmatpush1.bf16.xpose.msra.mxu0 0
        %1182 = vmatprep.subr.bf16.mxu0 0
        %1183 = vmatpush1.bf16.xpose.msra.mxu0 0
        %1184 = vmatprep.subr.bf16.mxu0 0
        %1185 = vmatpush1.bf16.xpose.msra.mxu0 0
        %1186 = vmatprep.subr.bf16.mxu0 0
        %1187 = vmatpush1.bf16.xpose.msra.mxu0 0
        %1188 = vmatprep.mubr.bf16.mxu0 0
        %1189 = vmatmul.mubr.bf16.gmra.mrb[0].mxu0 %v1151
        %v1190 = vpop.f32.mrb[0].mxu0
        %v1191 = vadd.f32 %v800, %v1190
        %v1192 = vpop.f32.mrb[0].mxu0
        %v1193 = vpop.f32.mrb[0].mxu0
        %v1194 = vpop.f32.mrb[0].mxu0
        %1195 = vdwg.mxu0
        %v1196 = vsel %vm805, %v1191, -inf
        %1197 = vmax.xlane.f32.xlu0 %v1196
        %v1198 = vpop.xlane.xlu0 %1197
        %v1199 = vsub.f32 %v1191, %v1198
        %v1200 = vmul.f32 %v1199, 1.442695
        %v1201 = vpow.pop %v1200
        %v1202 = vsel %vm805, %v1201, 0.0
        %1203 = vadd.xlane.f32.xlu0 %v1202
        %v1204 = vpop.xlane.xlu0 %1203
        %v1205 = vrcp.pop %v1204
        %v1206 = vmul.f32 %v1201, %v1205
        %v1207 = vpack.c.bf16 %v1206, %v1206
        %1208 = vrot.lane.b32.xlu0 %v794, 40
        %v1209 = vpop.permute.xlu0 %1208
        %v1211 = vsel %vm805, %v1207, 0
        %v1214 = vsel %vm869, %v1209, 0
        %1216 = vmatprep.subr.bf16.mxu0 0
        %1217 = vmatpush1.bf16.msra.mxu0 %v1214
        %1218 = vmatprep.subr.bf16.mxu0 0
        %1219 = vmatpush1.bf16.msra.mxu0 0
        %1220 = vmatprep.subr.bf16.mxu0 0
        %1221 = vmatpush1.bf16.msra.mxu0 0
        %1222 = vmatprep.subr.bf16.mxu0 0
        %1223 = vmatpush1.bf16.msra.mxu0 0
        %1224 = vmatprep.subr.bf16.mxu0 0
        %1225 = vmatpush1.bf16.msra.mxu0 0
        %1226 = vmatprep.subr.bf16.mxu0 0
        %1227 = vmatpush1.bf16.msra.mxu0 0
        %1228 = vmatprep.subr.bf16.mxu0 0
        %1229 = vmatpush1.bf16.msra.mxu0 0
        %1230 = vmatprep.subr.bf16.mxu0 0
        %1231 = vmatpush1.bf16.msra.mxu0 0
        %1232 = vmatprep.subr.bf16.mxu0 0
        %1233 = vmatpush1.bf16.msra.mxu0 0
        %1234 = vmatprep.subr.bf16.mxu0 0
        %1235 = vmatpush1.bf16.msra.mxu0 0
        %1236 = vmatprep.subr.bf16.mxu0 0
        %1237 = vmatpush1.bf16.msra.mxu0 0
        %1238 = vmatprep.subr.bf16.mxu0 0
        %1239 = vmatpush1.bf16.msra.mxu0 0
        %1240 = vmatprep.subr.bf16.mxu0 0
        %1241 = vmatpush1.bf16.msra.mxu0 0
        %1242 = vmatprep.subr.bf16.mxu0 0
        %1243 = vmatpush1.bf16.msra.mxu0 0
        %1244 = vmatprep.subr.bf16.mxu0 0
        %1245 = vmatpush1.bf16.msra.mxu0 0
        %1246 = vmatprep.subr.bf16.mxu0 0
        %1247 = vmatpush1.bf16.msra.mxu0 0
        %1248 = vmatprep.mubr.bf16.mxu0 0
        %1249 = vmatmul.mubr.bf16.gmra.mrb[0].mxu0 %v1211
        %v1250 = vpop.f32.mrb[0].mxu0
        %v1251 = vadd.f32 0.0, %v1250
        %v1252 = vpop.f32.mrb[0].mxu0
        %v1253 = vpop.f32.mrb[0].mxu0
        %v1254 = vpop.f32.mrb[0].mxu0
        %1255 = vdwg.mxu0
        %1257 = vrot.lane.b32.xlu0 %v1251, 24
        %v1258 = vpop.permute.xlu0 %1257
        %vm1260 = vcmask 261312
        %1261 = vst.msk [vmem:[#allocation3] sm:$0xff] %vm1260, %v1258
        %s1262 = scalar_lea.vmem %s618, 1
        %v1263 = vld [vmem:[%s1262] sm:$0x1]
        %v1265 = vlaneseq
        %v1266 = vshrl.u32 %v1265, 7
        %v1267 = vsub.s32 0, %v1266
        %v1268 = vrot.slane %v1263, %v1267
        %v1270 = vrot.slane %v794, 4
        %1271 = vrot.lane.b32.xlu0 %v1270, 96
        %v1272 = vpop.permute.xlu0 %1271
        %v1274 = vsel %vm805, %v1270, 0
        %v1277 = vsel %vm805, %v1272, 0
        %1279 = vmatprep.subr.bf16.mxu0 0
        %1280 = vmatpush1.bf16.xpose.msra.mxu0 %v1277
        %1281 = vmatprep.subr.bf16.mxu0 0
        %1282 = vmatpush1.bf16.xpose.msra.mxu0 0
        %1283 = vmatprep.subr.bf16.mxu0 0
        %1284 = vmatpush1.bf16.xpose.msra.mxu0 0
        %1285 = vmatprep.subr.bf16.mxu0 0
        %1286 = vmatpush1.bf16.xpose.msra.mxu0 0
        %1287 = vmatprep.subr.bf16.mxu0 0
        %1288 = vmatpush1.bf16.xpose.msra.mxu0 0
        %1289 = vmatprep.subr.bf16.mxu0 0
        %1290 = vmatpush1.bf16.xpose.msra.mxu0 0
        %1291 = vmatprep.subr.bf16.mxu0 0
        %1292 = vmatpush1.bf16.xpose.msra.mxu0 0
        %1293 = vmatprep.subr.bf16.mxu0 0
        %1294 = vmatpush1.bf16.xpose.msra.mxu0 0
        %1295 = vmatprep.subr.bf16.mxu0 0
        %1296 = vmatpush1.bf16.xpose.msra.mxu0 0
        %1297 = vmatprep.subr.bf16.mxu0 0
        %1298 = vmatpush1.bf16.xpose.msra.mxu0 0
        %1299 = vmatprep.subr.bf16.mxu0 0
        %1300 = vmatpush1.bf16.xpose.msra.mxu0 0
        %1301 = vmatprep.subr.bf16.mxu0 0
        %1302 = vmatpush1.bf16.xpose.msra.mxu0 0
        %1303 = vmatprep.subr.bf16.mxu0 0
        %1304 = vmatpush1.bf16.xpose.msra.mxu0 0
        %1305 = vmatprep.subr.bf16.mxu0 0
        %1306 = vmatpush1.bf16.xpose.msra.mxu0 0
        %1307 = vmatprep.subr.bf16.mxu0 0
        %1308 = vmatpush1.bf16.xpose.msra.mxu0 0
        %1309 = vmatprep.subr.bf16.mxu0 0
        %1310 = vmatpush1.bf16.xpose.msra.mxu0 0
        %1311 = vmatprep.mubr.bf16.mxu0 0
        %1312 = vmatmul.mubr.bf16.gmra.mrb[0].mxu0 %v1274
        %v1313 = vpop.f32.mrb[0].mxu0
        %v1314 = vadd.f32 %v1268, %v1313
        %v1315 = vpop.f32.mrb[0].mxu0
        %v1316 = vpop.f32.mrb[0].mxu0
        %v1317 = vpop.f32.mrb[0].mxu0
        %1318 = vdwg.mxu0
        %v1319 = vsel %vm805, %v1314, -inf
        %1320 = vmax.xlane.f32.xlu0 %v1319
        %v1321 = vpop.xlane.xlu0 %1320
        %v1322 = vsub.f32 %v1314, %v1321
        %v1323 = vmul.f32 %v1322, 1.442695
        %v1324 = vpow.pop %v1323
        %v1325 = vsel %vm805, %v1324, 0.0
        %1326 = vadd.xlane.f32.xlu0 %v1325
        %v1327 = vpop.xlane.xlu0 %1326
        %v1328 = vrcp.pop %v1327
        %v1329 = vmul.f32 %v1324, %v1328
        %v1330 = vpack.c.bf16 %v1329, %v1329
        %1331 = vrot.lane.b32.xlu0 %v1270, 64
        %v1332 = vpop.permute.xlu0 %1331
        %v1334 = vsel %vm805, %v1330, 0
        %v1337 = vsel %vm869, %v1332, 0
        %1339 = vmatprep.subr.bf16.mxu0 0
        %1340 = vmatpush1.bf16.msra.mxu0 %v1337
        %1341 = vmatprep.subr.bf16.mxu0 0
        %1342 = vmatpush1.bf16.msra.mxu0 0
        %1343 = vmatprep.subr.bf16.mxu0 0
        %1344 = vmatpush1.bf16.msra.mxu0 0
        %1345 = vmatprep.subr.bf16.mxu0 0
        %1346 = vmatpush1.bf16.msra.mxu0 0
        %1347 = vmatprep.subr.bf16.mxu0 0
        %1348 = vmatpush1.bf16.msra.mxu0 0
        %1349 = vmatprep.subr.bf16.mxu0 0
        %1350 = vmatpush1.bf16.msra.mxu0 0
        %1351 = vmatprep.subr.bf16.mxu0 0
        %1352 = vmatpush1.bf16.msra.mxu0 0
        %1353 = vmatprep.subr.bf16.mxu0 0
        %1354 = vmatpush1.bf16.msra.mxu0 0
        %1355 = vmatprep.subr.bf16.mxu0 0
        %1356 = vmatpush1.bf16.msra.mxu0 0
        %1357 = vmatprep.subr.bf16.mxu0 0
        %1358 = vmatpush1.bf16.msra.mxu0 0
        %1359 = vmatprep.subr.bf16.mxu0 0
        %1360 = vmatpush1.bf16.msra.mxu0 0
        %1361 = vmatprep.subr.bf16.mxu0 0
        %1362 = vmatpush1.bf16.msra.mxu0 0
        %1363 = vmatprep.subr.bf16.mxu0 0
        %1364 = vmatpush1.bf16.msra.mxu0 0
        %1365 = vmatprep.subr.bf16.mxu0 0
        %1366 = vmatpush1.bf16.msra.mxu0 0
        %1367 = vmatprep.subr.bf16.mxu0 0
        %1368 = vmatpush1.bf16.msra.mxu0 0
        %1369 = vmatprep.subr.bf16.mxu0 0
        %1370 = vmatpush1.bf16.msra.mxu0 0
        %1371 = vmatprep.mubr.bf16.mxu0 0
        %1372 = vmatmul.mubr.bf16.gmra.mrb[0].mxu0 %v1334
        %v1373 = vpop.f32.mrb[0].mxu0
        %v1374 = vadd.f32 0.0, %v1373
        %v1375 = vpop.f32.mrb[0].mxu0
        %v1376 = vpop.f32.mrb[0].mxu0
        %v1377 = vpop.f32.mrb[0].mxu0
        %1378 = vdwg.mxu0
        %1379 = vst.msk [vmem:[#allocation3 + $0x8] sm:$0xff] %vm805, %v1374
        %1380 = vrot.lane.b32.xlu0 %v1270, 120
        %v1381 = vpop.permute.xlu0 %1380
        %1382 = vrot.lane.b32.xlu0 %v1270, 88
        %v1383 = vpop.permute.xlu0 %1382
        %v1385 = vsel %vm805, %v1381, 0
        %v1388 = vsel %vm805, %v1383, 0
        %1390 = vmatprep.subr.bf16.mxu0 0
        %1391 = vmatpush1.bf16.xpose.msra.mxu0 %v1388
        %1392 = vmatprep.subr.bf16.mxu0 0
        %1393 = vmatpush1.bf16.xpose.msra.mxu0 0
        %1394 = vmatprep.subr.bf16.mxu0 0
        %1395 = vmatpush1.bf16.xpose.msra.mxu0 0
        %1396 = vmatprep.subr.bf16.mxu0 0
        %1397 = vmatpush1.bf16.xpose.msra.mxu0 0
        %1398 = vmatprep.subr.bf16.mxu0 0
        %1399 = vmatpush1.bf16.xpose.msra.mxu0 0
        %1400 = vmatprep.subr.bf16.mxu0 0
        %1401 = vmatpush1.bf16.xpose.msra.mxu0 0
        %1402 = vmatprep.subr.bf16.mxu0 0
        %1403 = vmatpush1.bf16.xpose.msra.mxu0 0
        %1404 = vmatprep.subr.bf16.mxu0 0
        %1405 = vmatpush1.bf16.xpose.msra.mxu0 0
        %1406 = vmatprep.subr.bf16.mxu0 0
        %1407 = vmatpush1.bf16.xpose.msra.mxu0 0
        %1408 = vmatprep.subr.bf16.mxu0 0
        %1409 = vmatpush1.bf16.xpose.msra.mxu0 0
        %1410 = vmatprep.subr.bf16.mxu0 0
        %1411 = vmatpush1.bf16.xpose.msra.mxu0 0
        %1412 = vmatprep.subr.bf16.mxu0 0
        %1413 = vmatpush1.bf16.xpose.msra.mxu0 0
        %1414 = vmatprep.subr.bf16.mxu0 0
        %1415 = vmatpush1.bf16.xpose.msra.mxu0 0
        %1416 = vmatprep.subr.bf16.mxu0 0
        %1417 = vmatpush1.bf16.xpose.msra.mxu0 0
        %1418 = vmatprep.subr.bf16.mxu0 0
        %1419 = vmatpush1.bf16.xpose.msra.mxu0 0
        %1420 = vmatprep.subr.bf16.mxu0 0
        %1421 = vmatpush1.bf16.xpose.msra.mxu0 0
        %1422 = vmatprep.mubr.bf16.mxu0 0
        %1423 = vmatmul.mubr.bf16.gmra.mrb[0].mxu0 %v1385
        %v1424 = vpop.f32.mrb[0].mxu0
        %v1425 = vadd.f32 %v1268, %v1424
        %v1426 = vpop.f32.mrb[0].mxu0
        %v1427 = vpop.f32.mrb[0].mxu0
        %v1428 = vpop.f32.mrb[0].mxu0
        %1429 = vdwg.mxu0
        %v1430 = vsel %vm805, %v1425, -inf
        %1431 = vmax.xlane.f32.xlu0 %v1430
        %v1432 = vpop.xlane.xlu0 %1431
        %v1433 = vsub.f32 %v1425, %v1432
        %v1434 = vmul.f32 %v1433, 1.442695
        %v1435 = vpow.pop %v1434
        %v1436 = vsel %vm805, %v1435, 0.0
        %1437 = vadd.xlane.f32.xlu0 %v1436
        %v1438 = vpop.xlane.xlu0 %1437
        %v1439 = vrcp.pop %v1438
        %v1440 = vmul.f32 %v1435, %v1439
        %v1441 = vpack.c.bf16 %v1440, %v1440
        %1442 = vrot.lane.b32.xlu0 %v1270, 56
        %v1443 = vpop.permute.xlu0 %1442
        %v1445 = vsel %vm805, %v1441, 0
        %v1448 = vsel %vm869, %v1443, 0
        %1450 = vmatprep.subr.bf16.mxu0 0
        %1451 = vmatpush1.bf16.msra.mxu0 %v1448
        %1452 = vmatprep.subr.bf16.mxu0 0
        %1453 = vmatpush1.bf16.msra.mxu0 0
        %1454 = vmatprep.subr.bf16.mxu0 0
        %1455 = vmatpush1.bf16.msra.mxu0 0
        %1456 = vmatprep.subr.bf16.mxu0 0
        %1457 = vmatpush1.bf16.msra.mxu0 0
        %1458 = vmatprep.subr.bf16.mxu0 0
        %1459 = vmatpush1.bf16.msra.mxu0 0
        %1460 = vmatprep.subr.bf16.mxu0 0
        %1461 = vmatpush1.bf16.msra.mxu0 0
        %1462 = vmatprep.subr.bf16.mxu0 0
        %1463 = vmatpush1.bf16.msra.mxu0 0
        %1464 = vmatprep.subr.bf16.mxu0 0
        %1465 = vmatpush1.bf16.msra.mxu0 0
        %1466 = vmatprep.subr.bf16.mxu0 0
        %1467 = vmatpush1.bf16.msra.mxu0 0
        %1468 = vmatprep.subr.bf16.mxu0 0
        %1469 = vmatpush1.bf16.msra.mxu0 0
        %1470 = vmatprep.subr.bf16.mxu0 0
        %1471 = vmatpush1.bf16.msra.mxu0 0
        %1472 = vmatprep.subr.bf16.mxu0 0
        %1473 = vmatpush1.bf16.msra.mxu0 0
        %1474 = vmatprep.subr.bf16.mxu0 0
        %1475 = vmatpush1.bf16.msra.mxu0 0
        %1476 = vmatprep.subr.bf16.mxu0 0
        %1477 = vmatpush1.bf16.msra.mxu0 0
        %1478 = vmatprep.subr.bf16.mxu0 0
        %1479 = vmatpush1.bf16.msra.mxu0 0
        %1480 = vmatprep.subr.bf16.mxu0 0
        %1481 = vmatpush1.bf16.msra.mxu0 0
        %1482 = vmatprep.mubr.bf16.mxu0 0
        %1483 = vmatmul.mubr.bf16.gmra.mrb[0].mxu0 %v1445
        %v1484 = vpop.f32.mrb[0].mxu0
        %v1485 = vadd.f32 0.0, %v1484
        %v1486 = vpop.f32.mrb[0].mxu0
        %v1487 = vpop.f32.mrb[0].mxu0
        %v1488 = vpop.f32.mrb[0].mxu0
        %1489 = vdwg.mxu0
        %1491 = vrot.lane.b32.xlu0 %v1485, 8
        %v1492 = vpop.permute.xlu0 %1491
        %1494 = vst.msk [vmem:[#allocation3 + $0x8] sm:$0xff] %vm1028, %v1492
        %1495 = vrot.lane.b32.xlu0 %v1270, 112
        %v1496 = vpop.permute.xlu0 %1495
        %1497 = vrot.lane.b32.xlu0 %v1270, 80
        %v1498 = vpop.permute.xlu0 %1497
        %v1500 = vsel %vm805, %v1496, 0
        %v1503 = vsel %vm805, %v1498, 0
        %1505 = vmatprep.subr.bf16.mxu0 0
        %1506 = vmatpush1.bf16.xpose.msra.mxu0 %v1503
        %1507 = vmatprep.subr.bf16.mxu0 0
        %1508 = vmatpush1.bf16.xpose.msra.mxu0 0
        %1509 = vmatprep.subr.bf16.mxu0 0
        %1510 = vmatpush1.bf16.xpose.msra.mxu0 0
        %1511 = vmatprep.subr.bf16.mxu0 0
        %1512 = vmatpush1.bf16.xpose.msra.mxu0 0
        %1513 = vmatprep.subr.bf16.mxu0 0
        %1514 = vmatpush1.bf16.xpose.msra.mxu0 0
        %1515 = vmatprep.subr.bf16.mxu0 0
        %1516 = vmatpush1.bf16.xpose.msra.mxu0 0
        %1517 = vmatprep.subr.bf16.mxu0 0
        %1518 = vmatpush1.bf16.xpose.msra.mxu0 0
        %1519 = vmatprep.subr.bf16.mxu0 0
        %1520 = vmatpush1.bf16.xpose.msra.mxu0 0
        %1521 = vmatprep.subr.bf16.mxu0 0
        %1522 = vmatpush1.bf16.xpose.msra.mxu0 0
        %1523 = vmatprep.subr.bf16.mxu0 0
        %1524 = vmatpush1.bf16.xpose.msra.mxu0 0
        %1525 = vmatprep.subr.bf16.mxu0 0
        %1526 = vmatpush1.bf16.xpose.msra.mxu0 0
        %1527 = vmatprep.subr.bf16.mxu0 0
        %1528 = vmatpush1.bf16.xpose.msra.mxu0 0
        %1529 = vmatprep.subr.bf16.mxu0 0
        %1530 = vmatpush1.bf16.xpose.msra.mxu0 0
        %1531 = vmatprep.subr.bf16.mxu0 0
        %1532 = vmatpush1.bf16.xpose.msra.mxu0 0
        %1533 = vmatprep.subr.bf16.mxu0 0
        %1534 = vmatpush1.bf16.xpose.msra.mxu0 0
        %1535 = vmatprep.subr.bf16.mxu0 0
        %1536 = vmatpush1.bf16.xpose.msra.mxu0 0
        %1537 = vmatprep.mubr.bf16.mxu0 0
        %1538 = vmatmul.mubr.bf16.gmra.mrb[0].mxu0 %v1500
        %v1539 = vpop.f32.mrb[0].mxu0
        %v1540 = vadd.f32 %v1268, %v1539
        %v1541 = vpop.f32.mrb[0].mxu0
        %v1542 = vpop.f32.mrb[0].mxu0
        %v1543 = vpop.f32.mrb[0].mxu0
        %1544 = vdwg.mxu0
        %v1545 = vsel %vm805, %v1540, -inf
        %1546 = vmax.xlane.f32.xlu0 %v1545
        %v1547 = vpop.xlane.xlu0 %1546
        %v1548 = vsub.f32 %v1540, %v1547
        %v1549 = vmul.f32 %v1548, 1.442695
        %v1550 = vpow.pop %v1549
        %v1551 = vsel %vm805, %v1550, 0.0
        %1552 = vadd.xlane.f32.xlu0 %v1551
        %v1553 = vpop.xlane.xlu0 %1552
        %v1554 = vrcp.pop %v1553
        %v1555 = vmul.f32 %v1550, %v1554
        %v1556 = vpack.c.bf16 %v1555, %v1555
        %1557 = vrot.lane.b32.xlu0 %v1270, 48
        %v1558 = vpop.permute.xlu0 %1557
        %v1560 = vsel %vm805, %v1556, 0
        %v1563 = vsel %vm869, %v1558, 0
        %1565 = vmatprep.subr.bf16.mxu0 0
        %1566 = vmatpush1.bf16.msra.mxu0 %v1563
        %1567 = vmatprep.subr.bf16.mxu0 0
        %1568 = vmatpush1.bf16.msra.mxu0 0
        %1569 = vmatprep.subr.bf16.mxu0 0
        %1570 = vmatpush1.bf16.msra.mxu0 0
        %1571 = vmatprep.subr.bf16.mxu0 0
        %1572 = vmatpush1.bf16.msra.mxu0 0
        %1573 = vmatprep.subr.bf16.mxu0 0
        %1574 = vmatpush1.bf16.msra.mxu0 0
        %1575 = vmatprep.subr.bf16.mxu0 0
        %1576 = vmatpush1.bf16.msra.mxu0 0
        %1577 = vmatprep.subr.bf16.mxu0 0
        %1578 = vmatpush1.bf16.msra.mxu0 0
        %1579 = vmatprep.subr.bf16.mxu0 0
        %1580 = vmatpush1.bf16.msra.mxu0 0
        %1581 = vmatprep.subr.bf16.mxu0 0
        %1582 = vmatpush1.bf16.msra.mxu0 0
        %1583 = vmatprep.subr.bf16.mxu0 0
        %1584 = vmatpush1.bf16.msra.mxu0 0
        %1585 = vmatprep.subr.bf16.mxu0 0
        %1586 = vmatpush1.bf16.msra.mxu0 0
        %1587 = vmatprep.subr.bf16.mxu0 0
        %1588 = vmatpush1.bf16.msra.mxu0 0
        %1589 = vmatprep.subr.bf16.mxu0 0
        %1590 = vmatpush1.bf16.msra.mxu0 0
        %1591 = vmatprep.subr.bf16.mxu0 0
        %1592 = vmatpush1.bf16.msra.mxu0 0
        %1593 = vmatprep.subr.bf16.mxu0 0
        %1594 = vmatpush1.bf16.msra.mxu0 0
        %1595 = vmatprep.subr.bf16.mxu0 0
        %1596 = vmatpush1.bf16.msra.mxu0 0
        %1597 = vmatprep.mubr.bf16.mxu0 0
        %1598 = vmatmul.mubr.bf16.gmra.mrb[0].mxu0 %v1560
        %v1599 = vpop.f32.mrb[0].mxu0
        %v1600 = vadd.f32 0.0, %v1599
        %v1601 = vpop.f32.mrb[0].mxu0
        %v1602 = vpop.f32.mrb[0].mxu0
        %v1603 = vpop.f32.mrb[0].mxu0
        %1604 = vdwg.mxu0
        %1606 = vrot.lane.b32.xlu0 %v1600, 16
        %v1607 = vpop.permute.xlu0 %1606
        %1609 = vst.msk [vmem:[#allocation3 + $0x8] sm:$0xff] %vm1144, %v1607
        %1610 = vrot.lane.b32.xlu0 %v1270, 104
        %v1611 = vpop.permute.xlu0 %1610
        %1612 = vrot.lane.b32.xlu0 %v1270, 72
        %v1613 = vpop.permute.xlu0 %1612
        %v1615 = vsel %vm805, %v1611, 0
        %v1618 = vsel %vm805, %v1613, 0
        %1620 = vmatprep.subr.bf16.mxu0 0
        %1621 = vmatpush1.bf16.xpose.msra.mxu0 %v1618
        %1622 = vmatprep.subr.bf16.mxu0 0
        %1623 = vmatpush1.bf16.xpose.msra.mxu0 0
        %1624 = vmatprep.subr.bf16.mxu0 0
        %1625 = vmatpush1.bf16.xpose.msra.mxu0 0
        %1626 = vmatprep.subr.bf16.mxu0 0
        %1627 = vmatpush1.bf16.xpose.msra.mxu0 0
        %1628 = vmatprep.subr.bf16.mxu0 0
        %1629 = vmatpush1.bf16.xpose.msra.mxu0 0
        %1630 = vmatprep.subr.bf16.mxu0 0
        %1631 = vmatpush1.bf16.xpose.msra.mxu0 0
        %1632 = vmatprep.subr.bf16.mxu0 0
        %1633 = vmatpush1.bf16.xpose.msra.mxu0 0
        %1634 = vmatprep.subr.bf16.mxu0 0
        %1635 = vmatpush1.bf16.xpose.msra.mxu0 0
        %1636 = vmatprep.subr.bf16.mxu0 0
        %1637 = vmatpush1.bf16.xpose.msra.mxu0 0
        %1638 = vmatprep.subr.bf16.mxu0 0
        %1639 = vmatpush1.bf16.xpose.msra.mxu0 0
        %1640 = vmatprep.subr.bf16.mxu0 0
        %1641 = vmatpush1.bf16.xpose.msra.mxu0 0
        %1642 = vmatprep.subr.bf16.mxu0 0
        %1643 = vmatpush1.bf16.xpose.msra.mxu0 0
        %1644 = vmatprep.subr.bf16.mxu0 0
        %1645 = vmatpush1.bf16.xpose.msra.mxu0 0
        %1646 = vmatprep.subr.bf16.mxu0 0
        %1647 = vmatpush1.bf16.xpose.msra.mxu0 0
        %1648 = vmatprep.subr.bf16.mxu0 0
        %1649 = vmatpush1.bf16.xpose.msra.mxu0 0
        %1650 = vmatprep.subr.bf16.mxu0 0
        %1651 = vmatpush1.bf16.xpose.msra.mxu0 0
        %1652 = vmatprep.mubr.bf16.mxu0 0
        %1653 = vmatmul.mubr.bf16.gmra.mrb[0].mxu0 %v1615
        %v1654 = vpop.f32.mrb[0].mxu0
        %v1655 = vadd.f32 %v1268, %v1654
        %v1656 = vpop.f32.mrb[0].mxu0
        %v1657 = vpop.f32.mrb[0].mxu0
        %v1658 = vpop.f32.mrb[0].mxu0
        %1659 = vdwg.mxu0
        %v1660 = vsel %vm805, %v1655, -inf
        %1661 = vmax.xlane.f32.xlu0 %v1660
        %v1662 = vpop.xlane.xlu0 %1661
        %v1663 = vsub.f32 %v1655, %v1662
        %v1664 = vmul.f32 %v1663, 1.442695
        %v1665 = vpow.pop %v1664
        %v1666 = vsel %vm805, %v1665, 0.0
        %1667 = vadd.xlane.f32.xlu0 %v1666
        %v1668 = vpop.xlane.xlu0 %1667
        %v1669 = vrcp.pop %v1668
        %v1670 = vmul.f32 %v1665, %v1669
        %v1671 = vpack.c.bf16 %v1670, %v1670
        %1672 = vrot.lane.b32.xlu0 %v1270, 40
        %v1673 = vpop.permute.xlu0 %1672
        %v1675 = vsel %vm805, %v1671, 0
        %v1678 = vsel %vm869, %v1673, 0
        %1680 = vmatprep.subr.bf16.mxu0 0
        %1681 = vmatpush1.bf16.msra.mxu0 %v1678
        %1682 = vmatprep.subr.bf16.mxu0 0
        %1683 = vmatpush1.bf16.msra.mxu0 0
        %1684 = vmatprep.subr.bf16.mxu0 0
        %1685 = vmatpush1.bf16.msra.mxu0 0
        %1686 = vmatprep.subr.bf16.mxu0 0
        %1687 = vmatpush1.bf16.msra.mxu0 0
        %1688 = vmatprep.subr.bf16.mxu0 0
        %1689 = vmatpush1.bf16.msra.mxu0 0
        %1690 = vmatprep.subr.bf16.mxu0 0
        %1691 = vmatpush1.bf16.msra.mxu0 0
        %1692 = vmatprep.subr.bf16.mxu0 0
        %1693 = vmatpush1.bf16.msra.mxu0 0
        %1694 = vmatprep.subr.bf16.mxu0 0
        %1695 = vmatpush1.bf16.msra.mxu0 0
        %1696 = vmatprep.subr.bf16.mxu0 0
        %1697 = vmatpush1.bf16.msra.mxu0 0
        %1698 = vmatprep.subr.bf16.mxu0 0
        %1699 = vmatpush1.bf16.msra.mxu0 0
        %1700 = vmatprep.subr.bf16.mxu0 0
        %1701 = vmatpush1.bf16.msra.mxu0 0
        %1702 = vmatprep.subr.bf16.mxu0 0
        %1703 = vmatpush1.bf16.msra.mxu0 0
        %1704 = vmatprep.subr.bf16.mxu0 0
        %1705 = vmatpush1.bf16.msra.mxu0 0
        %1706 = vmatprep.subr.bf16.mxu0 0
        %1707 = vmatpush1.bf16.msra.mxu0 0
        %1708 = vmatprep.subr.bf16.mxu0 0
        %1709 = vmatpush1.bf16.msra.mxu0 0
        %1710 = vmatprep.subr.bf16.mxu0 0
        %1711 = vmatpush1.bf16.msra.mxu0 0
        %1712 = vmatprep.mubr.bf16.mxu0 0
        %1713 = vmatmul.mubr.bf16.gmra.mrb[0].mxu0 %v1675
        %v1714 = vpop.f32.mrb[0].mxu0
        %v1715 = vadd.f32 0.0, %v1714
        %v1716 = vpop.f32.mrb[0].mxu0
        %v1717 = vpop.f32.mrb[0].mxu0
        %v1718 = vpop.f32.mrb[0].mxu0
        %1719 = vdwg.mxu0
        %1721 = vrot.lane.b32.xlu0 %v1715, 24
        %v1722 = vpop.permute.xlu0 %1721
        %1724 = vst.msk [vmem:[#allocation3 + $0x8] sm:$0xff] %vm1260, %v1722
        %v1725 = vld [vmem:[#allocation3] sm:$0xff]
        %v1726 = vld [vmem:[#allocation3 + $0x8] sm:$0xff]
        %v1727 = vpack.c.bf16 %v1726, %v1725
        %v1728 = vld [vmem:[%s629] sm:$0xf]
        %v1729 = vld [vmem:[%s629 + $0x4] sm:$0xf]
        %v1730 = vld [vmem:[%s629 + $0x8] sm:$0xf]
        %v1731 = vld [vmem:[%s629 + $0xc] sm:$0xf]
        %v1736 = vunpack.c.l.b16 %v1728
        %v1737 = vunpack.c.l.b16 %v1729
        %v1738 = vunpack.c.l.b16 %v1730
        %v1739 = vunpack.c.l.b16 %v1731
        %v1740 = vpack.c.b16 %v1737, %v1736
        %v1741 = vpack.c.b16 %v1739, %v1738
        %v1745 = vsel %vm674, %v1727, 0
        %1747 = vmatprep.subr.bf16.mxu0 0
        %1748 = vmatpush1.bf16.msra.mxu0 %v1740
        %1749 = vmatprep.subr.bf16.mxu0 0
        %1750 = vmatpush1.bf16.msra.mxu0 %v1741
        %1751 = vmatprep.subr.bf16.mxu0 0
        %1752 = vmatpush1.bf16.msra.mxu0 0
        %1753 = vmatprep.subr.bf16.mxu0 0
        %1754 = vmatpush1.bf16.msra.mxu0 0
        %1755 = vmatprep.subr.bf16.mxu0 0
        %1756 = vmatpush1.bf16.msra.mxu0 0
        %1757 = vmatprep.subr.bf16.mxu0 0
        %1758 = vmatpush1.bf16.msra.mxu0 0
        %1759 = vmatprep.subr.bf16.mxu0 0
        %1760 = vmatpush1.bf16.msra.mxu0 0
        %1761 = vmatprep.subr.bf16.mxu0 0
        %1762 = vmatpush1.bf16.msra.mxu0 0
        %1763 = vmatprep.subr.bf16.mxu0 0
        %1764 = vmatpush1.bf16.msra.mxu0 0
        %1765 = vmatprep.subr.bf16.mxu0 0
        %1766 = vmatpush1.bf16.msra.mxu0 0
        %1767 = vmatprep.subr.bf16.mxu0 0
        %1768 = vmatpush1.bf16.msra.mxu0 0
        %1769 = vmatprep.subr.bf16.mxu0 0
        %1770 = vmatpush1.bf16.msra.mxu0 0
        %1771 = vmatprep.subr.bf16.mxu0 0
        %1772 = vmatpush1.bf16.msra.mxu0 0
        %1773 = vmatprep.subr.bf16.mxu0 0
        %1774 = vmatpush1.bf16.msra.mxu0 0
        %1775 = vmatprep.subr.bf16.mxu0 0
        %1776 = vmatpush1.bf16.msra.mxu0 0
        %1777 = vmatprep.subr.bf16.mxu0 0
        %1778 = vmatpush1.bf16.msra.mxu0 0
        %1779 = vmatprep.mubr.bf16.mxu0 0
        %1780 = vmatmul.mubr.bf16.gmra.mrb[0].mxu0 %v1745
        %v1781 = vpop.f32.mrb[0].mxu0
        %v1782 = vadd.f32 0.0, %v1781
        %v1783 = vpop.f32.mrb[0].mxu0
        %v1784 = vpop.f32.mrb[0].mxu0
        %v1785 = vadd.f32 0.0, %v1784
        %v1786 = vpop.f32.mrb[0].mxu0
        %1787 = vdwg.mxu0
        %v1788 = vadd.f32 %v670, %v1782
        %v1789 = vadd.f32 %v671, %v1785
        %v1790 = vld [vmem:[%s654] sm:$0x1]
        %v1791 = vld [vmem:[%s657] sm:$0x1]
        %v1792 = vsel %vm674, %v1788, 0.0
        %1793 = vadd.xlane.f32.xlu0 %v1792
        %v1794 = vpop.xlane.xlu0 %1793
        %v1795 = vsel %vm674, %v1789, 0.0
        %1796 = vadd.xlane.f32.xlu0 %v1795
        %v1797 = vpop.xlane.xlu0 %1796
        %v1798 = vmul.f32 %v1794, %v681
        %v1799 = vmul.f32 %v1797, %v681
        %v1800 = vsub.f32 %v1788, %v1798
        %v1801 = vsub.f32 %v1789, %v1799
        %v1802 = vmul.f32 %v1800, %v1800
        %v1803 = vmul.f32 %v1801, %v1801
        %v1804 = vsel %vm674, %v1802, 0.0
        %1805 = vadd.xlane.f32.xlu0 %v1804
        %v1806 = vpop.xlane.xlu0 %1805
        %v1807 = vsel %vm674, %v1803, 0.0
        %1808 = vadd.xlane.f32.xlu0 %v1807
        %v1809 = vpop.xlane.xlu0 %1808
        %v1810 = vmul.f32 %v1806, %v694
        %v1811 = vmul.f32 %v1809, %v694
        %v1812 = vrsqrt.pop %v1810
        %v1813 = vmul.f32 %v1810, %v1812
        %vm1814 = vcmp.eq.f32.partialorder %v1810, inf
        %v1815 = vsel %vm1814, %v1810, %v1813
        %vm1816 = vcmp.eq.f32.partialorder %v1810, 0.0
        %v1817 = vand.u32 %v1810, 2147483648
        %v1818 = vsel %vm1816, %v1817, %v1815
        %v1819 = vrsqrt.pop %v1811
        %v1820 = vmul.f32 %v1811, %v1819
        %vm1821 = vcmp.eq.f32.partialorder %v1811, inf
        %v1822 = vsel %vm1821, %v1811, %v1820
        %vm1823 = vcmp.eq.f32.partialorder %v1811, 0.0
        %v1824 = vand.u32 %v1811, 2147483648
        %v1825 = vsel %vm1823, %v1824, %v1822
        %v1827 = vlaneseq
        %v1828 = vshrl.u32 %v1827, 7
        %v1829 = vsub.s32 0, %v1828
        %v1830 = vrot.slane %v1790, %v1829
        %v1832 = vmul.f32 %v1830, %v1800
        %v1833 = vmul.f32 %v1830, %v1801
        %v1834 = vadd.f32 %v1818, 1e-06
        %v1835 = vadd.f32 %v1825, 1e-06
        %v1836 = vrcp.pop %v1834
        %v1837 = vmul.f32 %v1832, %v1836
        %v1838 = vrcp.pop %v1835
        %v1839 = vmul.f32 %v1833, %v1838
        %v1841 = vlaneseq
        %v1842 = vshrl.u32 %v1841, 7
        %v1843 = vsub.s32 0, %v1842
        %v1844 = vrot.slane %v1791, %v1843
        %v1846 = vadd.f32 %v1837, %v1844
        %v1847 = vadd.f32 %v1839, %v1844
        %v1848 = vpack.c.bf16 %v1847, %v1846
        %v1849 = vld [vmem:[%s634] sm:$0xf]
        %v1850 = vld [vmem:[%s634 + $0x4] sm:$0xf]
        %v1851 = vld [vmem:[%s634 + $0x8] sm:$0xf]
        %v1852 = vld [vmem:[%s634 + $0xc] sm:$0xf]
        %v1853 = vld [vmem:[%s637] sm:$0x1]
        %v1855 = vlaneseq
        %v1856 = vshrl.u32 %v1855, 7
        %v1857 = vsub.s32 0, %v1856
        %v1858 = vrot.slane %v1853, %v1857
        %v1864 = vunpack.c.l.b16 %v1849
        %v1865 = vunpack.c.l.b16 %v1850
        %v1866 = vunpack.c.l.b16 %v1851
        %v1867 = vunpack.c.l.b16 %v1852
        %v1868 = vpack.c.b16 %v1865, %v1864
        %v1869 = vpack.c.b16 %v1867, %v1866
        %v1873 = vsel %vm674, %v1848, 0
        %1875 = vmatprep.subr.bf16.mxu0 0
        %1876 = vmatpush1.bf16.msra.mxu0 %v1868
        %1877 = vmatprep.subr.bf16.mxu0 0
        %1878 = vmatpush1.bf16.msra.mxu0 %v1869
        %1879 = vmatprep.subr.bf16.mxu0 0
        %1880 = vmatpush1.bf16.msra.mxu0 0
        %1881 = vmatprep.subr.bf16.mxu0 0
        %1882 = vmatpush1.bf16.msra.mxu0 0
        %1883 = vmatprep.subr.bf16.mxu0 0
        %1884 = vmatpush1.bf16.msra.mxu0 0
        %1885 = vmatprep.subr.bf16.mxu0 0
        %1886 = vmatpush1.bf16.msra.mxu0 0
        %1887 = vmatprep.subr.bf16.mxu0 0
        %1888 = vmatpush1.bf16.msra.mxu0 0
        %1889 = vmatprep.subr.bf16.mxu0 0
        %1890 = vmatpush1.bf16.msra.mxu0 0
        %1891 = vmatprep.subr.bf16.mxu0 0
        %1892 = vmatpush1.bf16.msra.mxu0 0
        %1893 = vmatprep.subr.bf16.mxu0 0
        %1894 = vmatpush1.bf16.msra.mxu0 0
        %1895 = vmatprep.subr.bf16.mxu0 0
        %1896 = vmatpush1.bf16.msra.mxu0 0
        %1897 = vmatprep.subr.bf16.mxu0 0
        %1898 = vmatpush1.bf16.msra.mxu0 0
        %1899 = vmatprep.subr.bf16.mxu0 0
        %1900 = vmatpush1.bf16.msra.mxu0 0
        %1901 = vmatprep.subr.bf16.mxu0 0
        %1902 = vmatpush1.bf16.msra.mxu0 0
        %1903 = vmatprep.subr.bf16.mxu0 0
        %1904 = vmatpush1.bf16.msra.mxu0 0
        %1905 = vmatprep.subr.bf16.mxu0 0
        %1906 = vmatpush1.bf16.msra.mxu0 0
        %1907 = vmatprep.mubr.bf16.mxu0 0
        %1908 = vmatmul.mubr.bf16.gmra.mrb[0].mxu0 %v1873
        %v1909 = vpop.f32.mrb[0].mxu0
        %v1910 = vadd.f32 %v1858, %v1909
        %v1911 = vpop.f32.mrb[0].mxu0
        %v1912 = vpop.f32.mrb[0].mxu0
        %v1913 = vadd.f32 %v1858, %v1912
        %v1914 = vpop.f32.mrb[0].mxu0
        %1915 = vdwg.mxu0
        %v1916 = vmax.f32 %v1910, 0.0
        %v1917 = vmax.f32 %v1913, 0.0
        %v1918 = vpack.c.bf16 %v1917, %v1916
        %v1919 = vld [vmem:[%s642] sm:$0xf]
        %v1920 = vld [vmem:[%s642 + $0x4] sm:$0xf]
        %v1921 = vld [vmem:[%s642 + $0x8] sm:$0xf]
        %v1922 = vld [vmem:[%s642 + $0xc] sm:$0xf]
        %v1923 = vld [vmem:[%s642 + $0x10] sm:$0xf]
        %v1924 = vld [vmem:[%s642 + $0x14] sm:$0xf]
        %v1925 = vld [vmem:[%s642 + $0x18] sm:$0xf]
        %v1926 = vld [vmem:[%s642 + $0x1c] sm:$0xf]
        %v1927 = vld [vmem:[%s645] sm:$0x1]
        %v1929 = vlaneseq
        %v1930 = vshrl.u32 %v1929, 7
        %v1931 = vsub.s32 0, %v1930
        %v1932 = vrot.slane %v1927, %v1931
        %v1942 = vunpack.c.l.b16 %v1919
        %v1943 = vunpack.c.l.b16 %v1920
        %v1944 = vunpack.c.l.b16 %v1921
        %v1945 = vunpack.c.l.b16 %v1922
        %v1946 = vunpack.c.l.b16 %v1923
        %v1947 = vunpack.c.l.b16 %v1924
        %v1948 = vunpack.c.l.b16 %v1925
        %v1949 = vunpack.c.l.b16 %v1926
        %v1950 = vpack.c.b16 %v1943, %v1942
        %v1951 = vpack.c.b16 %v1945, %v1944
        %v1952 = vpack.c.b16 %v1947, %v1946
        %v1953 = vpack.c.b16 %v1949, %v1948
        %vm1958 = vcmask 523264
        %v1960 = vsel %vm1958, %v1918, 0
        %1962 = vmatprep.subr.bf16.mxu0 0
        %1963 = vmatpush1.bf16.msra.mxu0 %v1950
        %1964 = vmatprep.subr.bf16.mxu0 0
        %1965 = vmatpush1.bf16.msra.mxu0 %v1951
        %1966 = vmatprep.subr.bf16.mxu0 0
        %1967 = vmatpush1.bf16.msra.mxu0 %v1952
        %1968 = vmatprep.subr.bf16.mxu0 0
        %1969 = vmatpush1.bf16.msra.mxu0 %v1953
        %1970 = vmatprep.subr.bf16.mxu0 0
        %1971 = vmatpush1.bf16.msra.mxu0 0
        %1972 = vmatprep.subr.bf16.mxu0 0
        %1973 = vmatpush1.bf16.msra.mxu0 0
        %1974 = vmatprep.subr.bf16.mxu0 0
        %1975 = vmatpush1.bf16.msra.mxu0 0
        %1976 = vmatprep.subr.bf16.mxu0 0
        %1977 = vmatpush1.bf16.msra.mxu0 0
        %1978 = vmatprep.subr.bf16.mxu0 0
        %1979 = vmatpush1.bf16.msra.mxu0 0
        %1980 = vmatprep.subr.bf16.mxu0 0
        %1981 = vmatpush1.bf16.msra.mxu0 0
        %1982 = vmatprep.subr.bf16.mxu0 0
        %1983 = vmatpush1.bf16.msra.mxu0 0
        %1984 = vmatprep.subr.bf16.mxu0 0
        %1985 = vmatpush1.bf16.msra.mxu0 0
        %1986 = vmatprep.subr.bf16.mxu0 0
        %1987 = vmatpush1.bf16.msra.mxu0 0
        %1988 = vmatprep.subr.bf16.mxu0 0
        %1989 = vmatpush1.bf16.msra.mxu0 0
        %1990 = vmatprep.subr.bf16.mxu0 0
        %1991 = vmatpush1.bf16.msra.mxu0 0
        %1992 = vmatprep.subr.bf16.mxu0 0
        %1993 = vmatpush1.bf16.msra.mxu0 0
        %1994 = vmatprep.mubr.bf16.mxu0 0
        %1995 = vmatmul.mubr.bf16.gmra.mrb[0].mxu0 %v1960
        %v1996 = vpop.f32.mrb[0].mxu0
        %v1997 = vadd.f32 %v1932, %v1996
        %v1998 = vpop.f32.mrb[0].mxu0
        %v1999 = vpop.f32.mrb[0].mxu0
        %v2000 = vadd.f32 %v1932, %v1999
        %v2001 = vpop.f32.mrb[0].mxu0
        %2002 = vdwg.mxu0
        %v2003 = vadd.f32 %v1788, %v1997
        %v2004 = vadd.f32 %v1789, %v2000
        %2005 = vst.msk [vmem:[#allocation2] sm:$0xff] %vm674, %v2003
        %2006 = vst.msk [vmem:[#allocation2 + $0x8] sm:$0xff] %vm674, %v2004
        %p2007 = scmp.eq.s32.totalorder %s32, 1
        // Predicated region
        $region85: #{tpu_custom_call.1} parent=75 // pred_check
          %p2008 = pneg %p2007
        $region86: #{tpu_custom_call.1} parent=75 // pred_check_branch
          %2010 = sbr.rel (%p2008) target = $region88
        $region87: #{tpu_custom_call.1} parent=75 // pred_region
          %v2011 = vld [vmem:[%s12] sm:$0x1]
          %v2012 = vld [vmem:[%s13] sm:$0x1]
          %v2013 = vsel %vm674, %v2003, 0.0
          %2014 = vadd.xlane.f32.xlu0 %v2013
          %v2015 = vpop.xlane.xlu0 %2014
          %v2016 = vsel %vm674, %v2004, 0.0
          %2017 = vadd.xlane.f32.xlu0 %v2016
          %v2018 = vpop.xlane.xlu0 %2017
          %v2019 = vmul.f32 %v2015, %v681
          %v2020 = vmul.f32 %v2018, %v681
          %v2021 = vsub.f32 %v2003, %v2019
          %v2022 = vsub.f32 %v2004, %v2020
          %v2023 = vmul.f32 %v2021, %v2021
          %v2024 = vmul.f32 %v2022, %v2022
          %v2025 = vsel %vm674, %v2023, 0.0
          %2026 = vadd.xlane.f32.xlu0 %v2025
          %v2027 = vpop.xlane.xlu0 %2026
          %v2028 = vsel %vm674, %v2024, 0.0
          %2029 = vadd.xlane.f32.xlu0 %v2028
          %v2030 = vpop.xlane.xlu0 %2029
          %v2031 = vmul.f32 %v2027, %v694
          %v2032 = vmul.f32 %v2030, %v694
          %v2033 = vrsqrt.pop %v2031
          %v2034 = vmul.f32 %v2031, %v2033
          %vm2035 = vcmp.eq.f32.partialorder %v2031, inf
          %v2036 = vsel %vm2035, %v2031, %v2034
          %vm2037 = vcmp.eq.f32.partialorder %v2031, 0.0
          %v2038 = vand.u32 %v2031, 2147483648
          %v2039 = vsel %vm2037, %v2038, %v2036
          %v2040 = vrsqrt.pop %v2032
          %v2041 = vmul.f32 %v2032, %v2040
          %vm2042 = vcmp.eq.f32.partialorder %v2032, inf
          %v2043 = vsel %vm2042, %v2032, %v2041
          %vm2044 = vcmp.eq.f32.partialorder %v2032, 0.0
          %v2045 = vand.u32 %v2032, 2147483648
          %v2046 = vsel %vm2044, %v2045, %v2043
          %v2048 = vlaneseq
          %v2049 = vshrl.u32 %v2048, 7
          %v2050 = vsub.s32 0, %v2049
          %v2051 = vrot.slane %v2011, %v2050
          %v2053 = vmul.f32 %v2051, %v2021
          %v2054 = vmul.f32 %v2051, %v2022
          %v2055 = vadd.f32 %v2039, 1e-06
          %v2056 = vadd.f32 %v2046, 1e-06
          %v2057 = vrcp.pop %v2055
          %v2058 = vmul.f32 %v2053, %v2057
          %v2059 = vrcp.pop %v2056
          %v2060 = vmul.f32 %v2054, %v2059
          %v2062 = vlaneseq
          %v2063 = vshrl.u32 %v2062, 7
          %v2064 = vsub.s32 0, %v2063
          %v2065 = vrot.slane %v2012, %v2064
          %v2067 = vadd.f32 %v2058, %v2065
          %v2068 = vadd.f32 %v2060, %v2065
          %2069 = vst.msk [vmem:[#allocation7] sm:$0xff] %vm674, %v2067
          %s2070 = scalar_lea.vmem [#allocation7], 8
          %2071 = vst.msk [vmem:[%s2070] sm:$0xff] %vm674, %v2068
        $region88: #{tpu_custom_call.1} parent=75 // pred_fallthru
          _
        // Predicated region
        $region89: #{tpu_custom_call.1} parent=75 // pred_check
          %p2072 = pneg %p411
        $region90: #{tpu_custom_call.1} parent=75 // pred_check_branch
          %2074 = sbr.rel (%p2072) target = $region92
        $region91: #{tpu_custom_call.1} parent=75 // pred_region
          %s2075 = smul.u32 2, %s31
          %s2077 = ssub.s32 256, 256
          %2078 = vsyncadd [#allocation6], %s2077
          %s2079 = smul.addr %s2075, 128
          %s2080 = scalar_lea.hbm %s14, %s2079
          %s2081 = sshll.u32 [#allocation7], 4
          %s2082 = int_to_ptr.vmem [resolvable:$true] %s2081
          %2087 = dma.vmem_to_hbm [thread:$0]  %s2082, 256, %s2080, [#allocation6], 128, 128, 8
        $region92: #{tpu_custom_call.1} parent=75 // pred_fallthru
          _
        // Predicated region
        $region93: #{tpu_custom_call.1} parent=75 // pred_check
          %p2088 = pneg %p411
        $region94: #{tpu_custom_call.1} parent=75 // pred_check_branch
          %2090 = sbr.rel (%p2088) target = $region96
        $region95: #{tpu_custom_call.1} parent=75 // pred_region
          %2091 = dma.done [#allocation6], 256
        $region96: #{tpu_custom_call.1} parent=75 // pred_fallthru
          _
      $region76: #{tpu_custom_call.1} parent=5 // pred_fallthru
        _
      %p2092 = scmp.le.s32.totalorder 2, %s22
      // Predicated region
      $region97: #{tpu_custom_call.1} parent=5 // pred_check
        %p2093 = pneg %p2092
      $region98: #{tpu_custom_call.1} parent=5 // pred_check_branch
        %2095 = sbr.rel (%p2093) target = $region100
      $region99: #{tpu_custom_call.1} parent=5 // pred_region
        %s2096 = ssub.s32 %s22, 2
      $region100: #{tpu_custom_call.1} parent=5 // pred_fallthru
        _
    $region6: #{tpu_custom_call.1} parent=1 // loop_footer
      %s26 = sadd.s32 1, %s22
    $region7: #{tpu_custom_call.1} parent=1 // loop_footer_branch
      %21 = sbr.rel target = $region3
    $region8: #{tpu_custom_call.1} parent=1 // loop_exit
      _
    %2097 = vsyncpa [#allocation5], 1
    %s2098 = scalar_lea.sflag [#allocation5], 1
    %2099 = vsyncpa %s2098, 1
    %2100 = vsyncpa [#allocation6], 1
    %s2101 = scalar_lea.sflag [#allocation6], 1
    %2102 = vsyncpa %s2101, 1

</llo_original>
